<compile_context>
chip_gen: v6e
topology: v6e:2x2x1
jax: 0.10.0
libtpu: 0.0.40
codegen_flags: <defaults>
</compile_context>

<pallas_src>
import jax
import jax.numpy as jnp
from jax.experimental import pallas as pl
from jax.experimental.pallas import tpu as pltpu


def _round_up(x, m):
    return ((x + m - 1) // m) * m


def _make_kernel(N, C, D2, D3, tile_n):
    inv_n = 1.0 / float(N)
    inv_e2 = 1.0 / float(N * D2)
    inv_e3 = 1.0 / float(N * D3)

    def kernel(logp_ref, y_ref, p2_ref, P_ref, p3_ref, F_ref, lv_ref,
               out_ref, acc1_ref, acc2_ref, acc3_ref):
        i = pl.program_id(0)

        @pl.when(i == 0)
        def _():
            acc1_ref[...] = jnp.zeros_like(acc1_ref)
            acc2_ref[...] = jnp.zeros_like(acc2_ref)
            acc3_ref[...] = jnp.zeros_like(acc3_ref)

        # Row-validity mask for the (possibly partial) last tile.
        rows = i * tile_n + jax.lax.broadcasted_iota(jnp.int32, (tile_n, 1), 0)
        valid = rows < N                                            # (tile_n, 1)

        # ---- NLL partial: accumulate selected log-probs (pure VPU) ----
        logp = logp_ref[...].astype(jnp.float32)                    # (tile_n, C)
        y = y_ref[...]                                              # (tile_n, 1) int32
        cls_ids = jax.lax.broadcasted_iota(jnp.int32, (tile_n, C), 1)
        sel = jnp.where(jnp.logical_and(valid, cls_ids == y), logp, 0.0)
        acc1_ref[...] += sel

        # ---- MSE partials (cast in-kernel, masked squared diffs) ----
        d2 = p2_ref[...].astype(jnp.float32) - P_ref[...].astype(jnp.float32)
        acc2_ref[...] += jnp.where(valid, d2 * d2, 0.0)

        d3 = p3_ref[...].astype(jnp.float32) - F_ref[...].astype(jnp.float32)
        acc3_ref[...] += jnp.where(valid, d3 * d3, 0.0)

        # ---- epilogue: single XLU collapse + uncertainty weighting ----
        @pl.when(i == pl.num_programs(0) - 1)
        def _():
            loss1 = -jnp.sum(acc1_ref[...]) * inv_n
            loss2 = jnp.sum(acc2_ref[...]) * inv_e2
            loss3 = jnp.sum(acc3_ref[...]) * inv_e3
            lv0 = lv_ref[0]
            lv1 = lv_ref[1]
            lv2 = lv_ref[2]
            out_ref[0, 0] = (jnp.exp(-lv0) * loss1 + lv0
                             + jnp.exp(-lv1) * loss2 + lv1
                             + jnp.exp(-lv2) * loss3 + lv2)

    return kernel


def multitask_loss(preds, y, P, F, log_vars, *, tile_n=128):
    """preds: tuple/list with preds[1]=(N,C) log-probs, preds[2]=(N,D2), preds[3]=(N,D3).
    y: (N,) int class ids.  P: (N,D2), F: (N,D3).  log_vars: (task_num>=3,) float."""
    logp, p2, p3 = preds[1], preds[2], preds[3]
    N, C = logp.shape
    D2 = p2.shape[-1]
    D3 = p3.shape[-1]

    # Tile the batch dim; keep sublane alignment (multiple of 8).
    tile_n = max(8, min(_round_up(tile_n, 8), _round_up(N, 8)))
    grid = (pl.cdiv(N, tile_n),)

    y2d = y.astype(jnp.int32).reshape(N, 1)
    lv = log_vars.astype(jnp.float32)

    vm = pltpu.MemorySpace.VMEM
    sm = pltpu.MemorySpace.SMEM

    in_specs = [
        pl.BlockSpec((tile_n, C), lambda i: (i, 0), memory_space=vm),   # log-probs
        pl.BlockSpec((tile_n, 1), lambda i: (i, 0), memory_space=vm),   # labels
        pl.BlockSpec((tile_n, D2), lambda i: (i, 0), memory_space=vm),  # preds[2]
        pl.BlockSpec((tile_n, D2), lambda i: (i, 0), memory_space=vm),  # P
        pl.BlockSpec((tile_n, D3), lambda i: (i, 0), memory_space=vm),  # preds[3]
        pl.BlockSpec((tile_n, D3), lambda i: (i, 0), memory_space=vm),  # F
        pl.BlockSpec(memory_space=sm),                                  # log_vars (whole)
    ]
    out_spec = pl.BlockSpec((1, 1), lambda i: (0, 0), memory_space=sm)

    kernel = _make_kernel(N, C, D2, D3, tile_n)

    bytes_accessed = int(sum(a.size * a.dtype.itemsize
                             for a in (logp, y2d, p2, P, p3, F)) + lv.size * 4 + 4)
    cost = pl.CostEstimate(
        flops=int(2 * logp.size + 3 * (p2.size + p3.size)),
        transcendentals=3,
        bytes_accessed=bytes_accessed,
    )

    out = pl.pallas_call(
        kernel,
        out_shape=jax.ShapeDtypeStruct((1, 1), jnp.float32),
        grid_spec=pltpu.PrefetchScalarGridSpec(
            num_scalar_prefetch=0,
            grid=grid,
            in_specs=in_specs,
            out_specs=out_spec,
            scratch_shapes=[
                pltpu.VMEM((tile_n, C), jnp.float32),
                pltpu.VMEM((tile_n, D2), jnp.float32),
                pltpu.VMEM((tile_n, D3), jnp.float32),
            ],
        ),
        compiler_params=pltpu.CompilerParams(
            dimension_semantics=("arbitrary",),
        ),
        cost_estimate=cost,
    )(logp, y2d, p2, P, p3, F, lv)
    return out[0, 0]


def _reference(preds, y, P, F, log_vars):
    logp = preds[1].astype(jnp.float32)
    n = logp.shape[0]
    loss1 = -jnp.mean(logp[jnp.arange(n), y])
    loss2 = jnp.mean((preds[2].astype(jnp.float32) - P.astype(jnp.float32)) ** 2)
    loss3 = jnp.mean((preds[3].astype(jnp.float32) - F.astype(jnp.float32)) ** 2)
    lv = log_vars.astype(jnp.float32)
    return (jnp.exp(-lv[0]) * loss1 + lv[0]
            + jnp.exp(-lv[1]) * loss2 + lv[1]
            + jnp.exp(-lv[2]) * loss3 + lv[2])


def _run_case(key, N, C, D2, D3, tile_n, log_vars):
    k0, k1, k2, k3, k4, k5 = jax.random.split(key, 6)
    logits = jax.random.normal(k0, (N, C), dtype=jnp.float32)
    logp = jax.nn.log_softmax(logits, axis=-1)
    pred0 = jnp.zeros((N, 1), dtype=jnp.float32)   # present but unused, as in the module
    pred2 = jax.random.normal(k1, (N, D2), dtype=jnp.float32)
    pred3 = jax.random.normal(k2, (N, D3), dtype=jnp.float32)
    preds = (pred0, logp, pred2, pred3)
    y = jax.random.randint(k3, (N,), 0, C, dtype=jnp.int32)
    P = jax.random.normal(k4, (N, D2), dtype=jnp.float32)
    F = jax.random.normal(k5, (N, D3), dtype=jnp.float32)

    out = multitask_loss(preds, y, P, F, log_vars, tile_n=tile_n)
    out = jax.block_until_ready(out)
    ref = _reference(preds, y, P, F, log_vars)
    assert jnp.allclose(out, ref, rtol=1e-5, atol=1e-5), (N, C, D2, D3, out, ref)


if __name__ == "__main__":
    key = jax.random.PRNGKey(0)
    ka, kb = jax.random.split(key, 2)

    task_num = 3
    # Deterministic parameter init, matching nn.Parameter(torch.zeros(task_num)).
    log_vars = jnp.zeros((task_num,), dtype=jnp.float32)

    # Case 1: multi-step grid, N divisible by the tile.
    _run_case(ka, N=256, C=16, D2=32, D3=32, tile_n=128, log_vars=log_vars)
    # Case 2: partial final tile (exercises in-kernel masking, true-N divisors).
    _run_case(kb, N=120, C=16, D2=32, D3=32, tile_n=64, log_vars=log_vars)

    print("KERNEL_OK")
</pallas_src>

<mosaic_0001>
module attributes {stable_mosaic.version = 11 : i64} {
  func.func @kernel(%arg0: i32, %arg1: memref<128x16xf32, #tpu.memory_space<vmem>>, %arg2: memref<128x1xi32, #tpu.memory_space<vmem>>, %arg3: memref<128x32xf32, #tpu.memory_space<vmem>>, %arg4: memref<128x32xf32, #tpu.memory_space<vmem>>, %arg5: memref<128x32xf32, #tpu.memory_space<vmem>>, %arg6: memref<128x32xf32, #tpu.memory_space<vmem>>, %arg7: memref<3xf32, #tpu.memory_space<smem>>, %arg8: memref<1x1xf32, #tpu.memory_space<smem>>, %arg9: memref<128x16xf32, #tpu.memory_space<vmem>>, %arg10: memref<128x32xf32, #tpu.memory_space<vmem>>, %arg11: memref<128x32xf32, #tpu.memory_space<vmem>>) attributes {dimension_semantics = [#tpu.dimension_semantics<arbitrary>], iteration_bounds = array<i64: 2>, scalar_prefetch = 0 : i64, scratch_operands = 3 : i64, tpu.core_type = #tpu.core_type<tc>, window_params = [{transform_indices = @transform_0, window_bounds = array<i64: 128, 16>}, {transform_indices = @transform_1, window_bounds = array<i64: 128, 1>}, {transform_indices = @transform_2, window_bounds = array<i64: 128, 32>}, {transform_indices = @transform_3, window_bounds = array<i64: 128, 32>}, {transform_indices = @transform_4, window_bounds = array<i64: 128, 32>}, {transform_indices = @transform_5, window_bounds = array<i64: 128, 32>}, {transform_indices = @transform_6, window_bounds = array<i64: 3>}, {transform_indices = @transform_7, window_bounds = array<i64: 1, 1>}]} {
    %c0_i32 = arith.constant 0 : i32
    %0 = arith.cmpi eq, %arg0, %c0_i32 : i32
    %1 = arith.extui %0 : i1 to i32
    %c0_i32_0 = arith.constant 0 : i32
    %2 = arith.cmpi ne, %1, %c0_i32_0 : i32
    scf.if %2 {
      %cst_27 = arith.constant 0.000000e+00 : f32
      %46 = vector.broadcast %cst_27 : f32 to vector<128x16xf32>
      %c0_28 = arith.constant 0 : index
      %c0_29 = arith.constant 0 : index
      %47 = vector.load %arg9[%c0_28, %c0_29] : memref<128x16xf32, #tpu.memory_space<vmem>>, vector<128x16xf32>
      tpu.vector_store %arg9[%c0_28, %c0_29], %46 {strides = array<i32>} : memref<128x16xf32, #tpu.memory_space<vmem>>, vector<128x16xf32>,
      %cst_30 = arith.constant 0.000000e+00 : f32
      %48 = vector.broadcast %cst_30 : f32 to vector<128x32xf32>
      %c0_31 = arith.constant 0 : index
      %c0_32 = arith.constant 0 : index
      %49 = vector.load %arg10[%c0_31, %c0_32] : memref<128x32xf32, #tpu.memory_space<vmem>>, vector<128x32xf32>
      tpu.vector_store %arg10[%c0_31, %c0_32], %48 {strides = array<i32>} : memref<128x32xf32, #tpu.memory_space<vmem>>, vector<128x32xf32>,
      %cst_33 = arith.constant 0.000000e+00 : f32
      %50 = vector.broadcast %cst_33 : f32 to vector<128x32xf32>
      %c0_34 = arith.constant 0 : index
      %c0_35 = arith.constant 0 : index
      %51 = vector.load %arg11[%c0_34, %c0_35] : memref<128x32xf32, #tpu.memory_space<vmem>>, vector<128x32xf32>
      tpu.vector_store %arg11[%c0_34, %c0_35], %50 {strides = array<i32>} : memref<128x32xf32, #tpu.memory_space<vmem>>, vector<128x32xf32>,
    } else {
    }
    %c128_i32 = arith.constant 128 : i32
    %3 = arith.muli %arg0, %c128_i32 : i32
    %4 = tpu.iota {dimensions = array<i32: 0>} : vector<128x1xi32>
    %5 = vector.broadcast %3 : i32 to vector<128x1xi32>
    %6 = arith.addi %5, %4 : vector<128x1xi32>
    %c256_i32 = arith.constant 256 : i32
    %7 = vector.broadcast %c256_i32 : i32 to vector<128x1xi32>
    %8 = arith.cmpi slt, %6, %7 : vector<128x1xi32>
    %c0 = arith.constant 0 : index
    %c0_1 = arith.constant 0 : index
    %9 = vector.load %arg1[%c0, %c0_1] : memref<128x16xf32, #tpu.memory_space<vmem>>, vector<128x16xf32>
    %c0_2 = arith.constant 0 : index
    %c0_3 = arith.constant 0 : index
    %10 = vector.load %arg2[%c0_2, %c0_3] : memref<128x1xi32, #tpu.memory_space<vmem>>, vector<128x1xi32>
    %11 = tpu.iota {dimensions = array<i32: 1>} : vector<128x16xi32>
    %12 = vector.broadcast %10 : vector<128x1xi32> to vector<128x16xi32>
    %13 = arith.cmpi eq, %11, %12 : vector<128x16xi32>
    %14 = vector.broadcast %8 : vector<128x1xi1> to vector<128x16xi1>
    %15 = arith.andi %14, %13 : vector<128x16xi1>
    %cst = arith.constant 0.000000e+00 : f32
    %16 = vector.broadcast %cst : f32 to vector<128x16xf32>
    %17 = arith.select %15, %9, %16 : vector<128x16xi1>, vector<128x16xf32>
    %c0_4 = arith.constant 0 : index
    %c0_5 = arith.constant 0 : index
    %18 = vector.load %arg9[%c0_4, %c0_5] : memref<128x16xf32, #tpu.memory_space<vmem>>, vector<128x16xf32>
    %19 = arith.addf %18, %17 : vector<128x16xf32>
    %c0_6 = arith.constant 0 : index
    %c0_7 = arith.constant 0 : index
    %20 = vector.load %arg9[%c0_6, %c0_7] : memref<128x16xf32, #tpu.memory_space<vmem>>, vector<128x16xf32>
    tpu.vector_store %arg9[%c0_6, %c0_7], %19 {strides = array<i32>} : memref<128x16xf32, #tpu.memory_space<vmem>>, vector<128x16xf32>,
    %c0_8 = arith.constant 0 : index
    %c0_9 = arith.constant 0 : index
    %21 = vector.load %arg3[%c0_8, %c0_9] : memref<128x32xf32, #tpu.memory_space<vmem>>, vector<128x32xf32>
    %c0_10 = arith.constant 0 : index
    %c0_11 = arith.constant 0 : index
    %22 = vector.load %arg4[%c0_10, %c0_11] : memref<128x32xf32, #tpu.memory_space<vmem>>, vector<128x32xf32>
    %23 = arith.subf %21, %22 : vector<128x32xf32>
    %c0_12 = arith.constant 0 : index
    %c0_13 = arith.constant 0 : index
    %24 = vector.load %arg10[%c0_12, %c0_13] : memref<128x32xf32, #tpu.memory_space<vmem>>, vector<128x32xf32>
    %25 = arith.mulf %23, %23 : vector<128x32xf32>
    %cst_14 = arith.constant 0.000000e+00 : f32
    %26 = vector.shape_cast %8 : vector<128x1xi1> to vector<128x1xi1>
    %27 = vector.broadcast %26 : vector<128x1xi1> to vector<128x32xi1>
    %28 = vector.broadcast %cst_14 : f32 to vector<128x32xf32>
    %29 = arith.select %27, %25, %28 : vector<128x32xi1>, vector<128x32xf32>
    %30 = arith.addf %24, %29 : vector<128x32xf32>
    %c0_15 = arith.constant 0 : index
    %c0_16 = arith.constant 0 : index
    %31 = vector.load %arg10[%c0_15, %c0_16] : memref<128x32xf32, #tpu.memory_space<vmem>>, vector<128x32xf32>
    tpu.vector_store %arg10[%c0_15, %c0_16], %30 {strides = array<i32>} : memref<128x32xf32, #tpu.memory_space<vmem>>, vector<128x32xf32>,
    %c0_17 = arith.constant 0 : index
    %c0_18 = arith.constant 0 : index
    %32 = vector.load %arg5[%c0_17, %c0_18] : memref<128x32xf32, #tpu.memory_space<vmem>>, vector<128x32xf32>
    %c0_19 = arith.constant 0 : index
    %c0_20 = arith.constant 0 : index
    %33 = vector.load %arg6[%c0_19, %c0_20] : memref<128x32xf32, #tpu.memory_space<vmem>>, vector<128x32xf32>
    %34 = arith.subf %32, %33 : vector<128x32xf32>
    %c0_21 = arith.constant 0 : index
    %c0_22 = arith.constant 0 : index
    %35 = vector.load %arg11[%c0_21, %c0_22] : memref<128x32xf32, #tpu.memory_space<vmem>>, vector<128x32xf32>
    %36 = arith.mulf %34, %34 : vector<128x32xf32>
    %cst_23 = arith.constant 0.000000e+00 : f32
    %37 = vector.shape_cast %8 : vector<128x1xi1> to vector<128x1xi1>
    %38 = vector.broadcast %37 : vector<128x1xi1> to vector<128x32xi1>
    %39 = vector.broadcast %cst_23 : f32 to vector<128x32xf32>
    %40 = arith.select %38, %36, %39 : vector<128x32xi1>, vector<128x32xf32>
    %41 = arith.addf %35, %40 : vector<128x32xf32>
    %c0_24 = arith.constant 0 : index
    %c0_25 = arith.constant 0 : index
    %42 = vector.load %arg11[%c0_24, %c0_25] : memref<128x32xf32, #tpu.memory_space<vmem>>, vector<128x32xf32>
    tpu.vector_store %arg11[%c0_24, %c0_25], %41 {strides = array<i32>} : memref<128x32xf32, #tpu.memory_space<vmem>>, vector<128x32xf32>,
    %c1_i32 = arith.constant 1 : i32
    %43 = arith.cmpi eq, %arg0, %c1_i32 : i32
    %44 = arith.extui %43 : i1 to i32
    %c0_i32_26 = arith.constant 0 : i32
    %45 = arith.cmpi ne, %44, %c0_i32_26 : i32
    scf.if %45 {
      %c0_27 = arith.constant 0 : index
      %c0_28 = arith.constant 0 : index
      %46 = vector.load %arg9[%c0_27, %c0_28] : memref<128x16xf32, #tpu.memory_space<vmem>>, vector<128x16xf32>
      %47 = vector.shape_cast %46 : vector<128x16xf32> to vector<1x128x16xf32>
      %cst_29 = arith.constant dense<0.000000e+00> : vector<1xf32>
      %48 = vector.multi_reduction <add>, %47, %cst_29 [1, 2] : vector<1x128x16xf32> to vector<1xf32>
      %49 = vector.shape_cast %48 : vector<1xf32> to vector<1x1x1xf32>
      %50 = vector.extract %49[0, 0, 0] : f32 from vector<1x1x1xf32>
      %cst_30 = arith.constant 0.000000e+00 : f32
      %51 = arith.subf %cst_30, %50 : f32
      %cst_31 = arith.constant 3.906250e-03 : f32
      %52 = arith.mulf %51, %cst_31 : f32
      %c0_32 = arith.constant 0 : index
      %c0_33 = arith.constant 0 : index
      %53 = vector.load %arg10[%c0_32, %c0_33] : memref<128x32xf32, #tpu.memory_space<vmem>>, vector<128x32xf32>
      %54 = vector.shape_cast %53 : vector<128x32xf32> to vector<1x128x32xf32>
      %cst_34 = arith.constant dense<0.000000e+00> : vector<1xf32>
      %55 = vector.multi_reduction <add>, %54, %cst_34 [1, 2] : vector<1x128x32xf32> to vector<1xf32>
      %56 = vector.shape_cast %55 : vector<1xf32> to vector<1x1x1xf32>
      %57 = vector.extract %56[0, 0, 0] : f32 from vector<1x1x1xf32>
      %cst_35 = arith.constant 1.22070313E-4 : f32
      %58 = arith.mulf %57, %cst_35 : f32
      %c0_36 = arith.constant 0 : index
      %c0_37 = arith.constant 0 : index
      %59 = vector.load %arg11[%c0_36, %c0_37] : memref<128x32xf32, #tpu.memory_space<vmem>>, vector<128x32xf32>
      %60 = vector.shape_cast %59 : vector<128x32xf32> to vector<1x128x32xf32>
      %cst_38 = arith.constant dense<0.000000e+00> : vector<1xf32>
      %61 = vector.multi_reduction <add>, %60, %cst_38 [1, 2] : vector<1x128x32xf32> to vector<1xf32>
      %62 = vector.shape_cast %61 : vector<1xf32> to vector<1x1x1xf32>
      %63 = vector.extract %62[0, 0, 0] : f32 from vector<1x1x1xf32>
      %cst_39 = arith.constant 1.22070313E-4 : f32
      %64 = arith.mulf %63, %cst_39 : f32
      %c0_40 = arith.constant 0 : index
      %65 = memref.load %arg7[%c0_40] : memref<3xf32, #tpu.memory_space<smem>>
      %c1 = arith.constant 1 : index
      %66 = memref.load %arg7[%c1] : memref<3xf32, #tpu.memory_space<smem>>
      %c2 = arith.constant 2 : index
      %67 = memref.load %arg7[%c2] : memref<3xf32, #tpu.memory_space<smem>>
      %cst_41 = arith.constant 0.000000e+00 : f32
      %68 = arith.subf %cst_41, %65 : f32
      %69 = math.exp %68 : f32
      %70 = arith.mulf %69, %52 : f32
      %71 = arith.addf %70, %65 : f32
      %cst_42 = arith.constant 0.000000e+00 : f32
      %72 = arith.subf %cst_42, %66 : f32
      %73 = math.exp %72 : f32
      %74 = arith.mulf %73, %58 : f32
      %75 = arith.addf %71, %74 : f32
      %76 = arith.addf %75, %66 : f32
      %cst_43 = arith.constant 0.000000e+00 : f32
      %77 = arith.subf %cst_43, %67 : f32
      %78 = math.exp %77 : f32
      %79 = arith.mulf %78, %64 : f32
      %80 = arith.addf %76, %79 : f32
      %81 = arith.addf %80, %67 : f32
      %c0_44 = arith.constant 0 : index
      %c0_45 = arith.constant 0 : index
      %82 = memref.load %arg8[%c0_44, %c0_45] : memref<1x1xf32, #tpu.memory_space<smem>>
      memref.store %81, %arg8[%c0_44, %c0_45] : memref<1x1xf32, #tpu.memory_space<smem>>
    } else {
    }
    return
  }
  func.func @transform_0(%arg0: i32) -> (i32, i32) {
    %c0_i32 = arith.constant 0 : i32
    %c0_i32_0 = arith.constant 0 : i32
    return %arg0, %c0_i32 : i32, i32
  }
  func.func @transform_1(%arg0: i32) -> (i32, i32) {
    %c0_i32 = arith.constant 0 : i32
    %c0_i32_0 = arith.constant 0 : i32
    return %arg0, %c0_i32 : i32, i32
  }
  func.func @transform_2(%arg0: i32) -> (i32, i32) {
    %c0_i32 = arith.constant 0 : i32
    %c0_i32_0 = arith.constant 0 : i32
    return %arg0, %c0_i32 : i32, i32
  }
  func.func @transform_3(%arg0: i32) -> (i32, i32) {
    %c0_i32 = arith.constant 0 : i32
    %c0_i32_0 = arith.constant 0 : i32
    return %arg0, %c0_i32 : i32, i32
  }
  func.func @transform_4(%arg0: i32) -> (i32, i32) {
    %c0_i32 = arith.constant 0 : i32
    %c0_i32_0 = arith.constant 0 : i32
    return %arg0, %c0_i32 : i32, i32
  }
  func.func @transform_5(%arg0: i32) -> (i32, i32) {
    %c0_i32 = arith.constant 0 : i32
    %c0_i32_0 = arith.constant 0 : i32
    return %arg0, %c0_i32 : i32, i32
  }
  func.func @transform_6(%arg0: i32) -> i32 {
    %c0_i32 = arith.constant 0 : i32
    %c0_i32_0 = arith.constant 0 : i32
    return %c0_i32 : i32
  }
  func.func @transform_7(%arg0: i32) -> (i32, i32) {
    %c0_i32 = arith.constant 0 : i32
    %c0_i32_0 = arith.constant 0 : i32
    %c0_i32_1 = arith.constant 0 : i32
    return %c0_i32, %c0_i32_0 : i32, i32
  }
}

</mosaic_0001>

<llo_original>
// kernel: tpu_custom_call.1
$region0: #{tpu_custom_call.1}
  #allocation0 [shape = 'u32[]', space=smem, size = 0x4, offset = 0x4, fixed_abs, tag = 'smem constant byte address 0x4 - core index']
  #allocation1 [shape = 'u32[144,128]{1,0:T(1,128)}', space=vmem, size = 0x12000, scoped, tag = 'internal scratch']
  #allocation2 [shape = 'f32[128,16]{1,0:T(8,128)}', space=vmem, size = 0x10000, scoped, tag = 'scratch operand']
  #allocation3 [shape = 'f32[128,32]{1,0:T(8,128)}', space=vmem, size = 0x10000, scoped, tag = 'scratch operand']
  #allocation4 [shape = 'f32[128,32]{1,0:T(8,128)}', space=vmem, size = 0x10000, scoped, tag = 'scratch operand']
  %s0 = inlined_call_operand.vmem [shape: f32[256,16], index: 0, kind: input, shape index: {}]
  %s1 = inlined_call_operand.vmem [shape: s32[256,1], index: 1, kind: input, shape index: {}]
  %s2 = inlined_call_operand.vmem [shape: f32[256,32], index: 2, kind: input, shape index: {}]
  %s3 = inlined_call_operand.vmem [shape: f32[256,32], index: 3, kind: input, shape index: {}]
  %s4 = inlined_call_operand.vmem [shape: f32[256,32], index: 4, kind: input, shape index: {}]
  %s5 = inlined_call_operand.vmem [shape: f32[256,32], index: 5, kind: input, shape index: {}]
  %s6 = inlined_call_operand.vmem [shape: f32[3], index: 6, kind: input, shape index: {}]
  %s7 = inlined_call_operand.hbm [shape: f32[1,1], index: 7, kind: output, shape index: {}]
  %s8 = sld [smem:[#allocation0]]
  $region73: #{tpu_custom_call.1} parent=0
    _
  %s10 = ssub.s32 1, %s8
  %s11 = scalar_select 0, %s10, %s8
  $region1: #{tpu_custom_call.1} parent=0
    #allocation5 [shape = 'u8[512]{0}', space=smem, size = 0x200, scoped, tag = 'input window, operand 6, single buffered']
    #allocation6 [shape = 's32[2]{0}', space=sflag, size = 0x8, scoped, tag = 'scoped memory for tpu_custom_call.1']
    #allocation7 [shape = 's32[2]{0}', space=sflag, size = 0x8, scoped, tag = 'scoped memory for tpu_custom_call.1']
    #allocation8 [shape = 'u8[512]{0}', space=smem, size = 0x200, scoped, tag = 'output window, operand 0, single buffered']
    %12 = vsyncpa [#allocation7], 0
    %13 = vsyncpa [#allocation6], 0
    loop: start=0, step=1, limit=4
    $region2: #{tpu_custom_call.1} parent=1 // loop_pre_header
      _
    $region3: #{tpu_custom_call.1} parent=1 // loop_header
      %s15 = sphi 0, %s19
      %p16 = scmp.ge.s32.totalorder %s15, 4
      %s25 = sphi 0, %s27
      %s28 = sphi 0, %s25
      %s29 = sphi 0, %s28
      %s45 = sphi 0, %s29
      %s51 = sphi 0, %s53
      %s54 = sphi 0, %s51
      %s55 = sphi 0, %s54
      %s71 = sphi 0, %s55
      %s77 = sphi 0, %s79
      %s80 = sphi 0, %s77
      %s81 = sphi 0, %s80
      %s97 = sphi 0, %s81
      %s103 = sphi 0, %s105
      %s106 = sphi 0, %s103
      %s107 = sphi 0, %s106
      %s123 = sphi 0, %s107
      %s129 = sphi 0, %s131
      %s132 = sphi 0, %s129
      %s133 = sphi 0, %s132
      %s149 = sphi 0, %s133
      %s155 = sphi 0, %s157
      %s158 = sphi 0, %s155
      %s159 = sphi 0, %s158
      %s175 = sphi 0, %s159
      %s179 = sphi 0, %s179
      %s181 = sphi 0, %s179
      %s182 = sphi 0, %s181
      %s196 = sphi 0, %s182
      %s200 = sphi 0, %s200
      %s202 = sphi 0, %s200
      %s203 = sphi 0, %s202
      %s217 = sphi 0, %s203
    $region4: #{tpu_custom_call.1} parent=1 // loop_header_branch
      %18 = sbr.rel (%p16) target = $region8
    $region5: #{tpu_custom_call.1} parent=1 // loop_body
      %s20 = ssub.s32 %s15, 1
      %s21 = ssub.s32 %s15, 2
      %s22 = sadd.s32 %s15, 1
      %s23 = ssub.s32 %s15, %s22
      %p24 = scmp.eq.s32.totalorder %s23, 0
      %s26 = sadd.s32 %s25, 1
      %s27 = scalar_select %p24, %s25, %s26
      %p30 = pneg %p24
      %p31 = scmp.eq.s32.totalorder %s15, 1
      %p32 = por %p30, %p31
      %p33 = scmp.ne.s32.totalorder %s25, %s28
      %p34 = scmp.eq.s32.totalorder %s15, 0
      %p35 = por %p33, %p34
      %p36 = scmp.ne.s32.totalorder %s25, %s28
      %p37 = scmp.eq.s32.totalorder %s20, 1
      %p38 = por %p36, %p37
      %p39 = scmp.ne.s32.totalorder %s28, %s29
      %p40 = scmp.eq.s32.totalorder %s20, 0
      %p41 = por %p39, %p40
      %p42 = scmp.ne.s32.totalorder %s28, %s29
      %p43 = scmp.eq.s32.totalorder %s21, 1
      %p44 = por %p42, %p43
      %p46 = scmp.ne.s32.totalorder %s29, %s45
      %p47 = scmp.eq.s32.totalorder %s21, 0
      %p48 = por %p46, %p47
      %s49 = ssub.s32 %s15, %s22
      %p50 = scmp.eq.s32.totalorder %s49, 0
      %s52 = sadd.s32 %s51, 1
      %s53 = scalar_select %p50, %s51, %s52
      %p56 = pneg %p50
      %p57 = scmp.eq.s32.totalorder %s15, 1
      %p58 = por %p56, %p57
      %p59 = scmp.ne.s32.totalorder %s51, %s54
      %p60 = scmp.eq.s32.totalorder %s15, 0
      %p61 = por %p59, %p60
      %p62 = scmp.ne.s32.totalorder %s51, %s54
      %p63 = scmp.eq.s32.totalorder %s20, 1
      %p64 = por %p62, %p63
      %p65 = scmp.ne.s32.totalorder %s54, %s55
      %p66 = scmp.eq.s32.totalorder %s20, 0
      %p67 = por %p65, %p66
      %p68 = scmp.ne.s32.totalorder %s54, %s55
      %p69 = scmp.eq.s32.totalorder %s21, 1
      %p70 = por %p68, %p69
      %p72 = scmp.ne.s32.totalorder %s55, %s71
      %p73 = scmp.eq.s32.totalorder %s21, 0
      %p74 = por %p72, %p73
      %s75 = ssub.s32 %s15, %s22
      %p76 = scmp.eq.s32.totalorder %s75, 0
      %s78 = sadd.s32 %s77, 1
      %s79 = scalar_select %p76, %s77, %s78
      %p82 = pneg %p76
      %p83 = scmp.eq.s32.totalorder %s15, 1
      %p84 = por %p82, %p83
      %p85 = scmp.ne.s32.totalorder %s77, %s80
      %p86 = scmp.eq.s32.totalorder %s15, 0
      %p87 = por %p85, %p86
      %p88 = scmp.ne.s32.totalorder %s77, %s80
      %p89 = scmp.eq.s32.totalorder %s20, 1
      %p90 = por %p88, %p89
      %p91 = scmp.ne.s32.totalorder %s80, %s81
      %p92 = scmp.eq.s32.totalorder %s20, 0
      %p93 = por %p91, %p92
      %p94 = scmp.ne.s32.totalorder %s80, %s81
      %p95 = scmp.eq.s32.totalorder %s21, 1
      %p96 = por %p94, %p95
      %p98 = scmp.ne.s32.totalorder %s81, %s97
      %p99 = scmp.eq.s32.totalorder %s21, 0
      %p100 = por %p98, %p99
      %s101 = ssub.s32 %s15, %s22
      %p102 = scmp.eq.s32.totalorder %s101, 0
      %s104 = sadd.s32 %s103, 1
      %s105 = scalar_select %p102, %s103, %s104
      %p108 = pneg %p102
      %p109 = scmp.eq.s32.totalorder %s15, 1
      %p110 = por %p108, %p109
      %p111 = scmp.ne.s32.totalorder %s103, %s106
      %p112 = scmp.eq.s32.totalorder %s15, 0
      %p113 = por %p111, %p112
      %p114 = scmp.ne.s32.totalorder %s103, %s106
      %p115 = scmp.eq.s32.totalorder %s20, 1
      %p116 = por %p114, %p115
      %p117 = scmp.ne.s32.totalorder %s106, %s107
      %p118 = scmp.eq.s32.totalorder %s20, 0
      %p119 = por %p117, %p118
      %p120 = scmp.ne.s32.totalorder %s106, %s107
      %p121 = scmp.eq.s32.totalorder %s21, 1
      %p122 = por %p120, %p121
      %p124 = scmp.ne.s32.totalorder %s107, %s123
      %p125 = scmp.eq.s32.totalorder %s21, 0
      %p126 = por %p124, %p125
      %s127 = ssub.s32 %s15, %s22
      %p128 = scmp.eq.s32.totalorder %s127, 0
      %s130 = sadd.s32 %s129, 1
      %s131 = scalar_select %p128, %s129, %s130
      %p134 = pneg %p128
      %p135 = scmp.eq.s32.totalorder %s15, 1
      %p136 = por %p134, %p135
      %p137 = scmp.ne.s32.totalorder %s129, %s132
      %p138 = scmp.eq.s32.totalorder %s15, 0
      %p139 = por %p137, %p138
      %p140 = scmp.ne.s32.totalorder %s129, %s132
      %p141 = scmp.eq.s32.totalorder %s20, 1
      %p142 = por %p140, %p141
      %p143 = scmp.ne.s32.totalorder %s132, %s133
      %p144 = scmp.eq.s32.totalorder %s20, 0
      %p145 = por %p143, %p144
      %p146 = scmp.ne.s32.totalorder %s132, %s133
      %p147 = scmp.eq.s32.totalorder %s21, 1
      %p148 = por %p146, %p147
      %p150 = scmp.ne.s32.totalorder %s133, %s149
      %p151 = scmp.eq.s32.totalorder %s21, 0
      %p152 = por %p150, %p151
      %s153 = ssub.s32 %s15, %s22
      %p154 = scmp.eq.s32.totalorder %s153, 0
      %s156 = sadd.s32 %s155, 1
      %s157 = scalar_select %p154, %s155, %s156
      %p160 = pneg %p154
      %p161 = scmp.eq.s32.totalorder %s15, 1
      %p162 = por %p160, %p161
      %p163 = scmp.ne.s32.totalorder %s155, %s158
      %p164 = scmp.eq.s32.totalorder %s15, 0
      %p165 = por %p163, %p164
      %p166 = scmp.ne.s32.totalorder %s155, %s158
      %p167 = scmp.eq.s32.totalorder %s20, 1
      %p168 = por %p166, %p167
      %p169 = scmp.ne.s32.totalorder %s158, %s159
      %p170 = scmp.eq.s32.totalorder %s20, 0
      %p171 = por %p169, %p170
      %p172 = scmp.ne.s32.totalorder %s158, %s159
      %p173 = scmp.eq.s32.totalorder %s21, 1
      %p174 = por %p172, %p173
      %p176 = scmp.ne.s32.totalorder %s159, %s175
      %p177 = scmp.eq.s32.totalorder %s21, 0
      %p178 = por %p176, %p177
      %s180 = sadd.s32 %s179, 1
      %p183 = scmp.eq.s32.totalorder %s15, 1
      %p184 = scmp.ne.s32.totalorder %s179, %s181
      %p185 = scmp.eq.s32.totalorder %s15, 0
      %p186 = por %p184, %p185
      %p187 = scmp.ne.s32.totalorder %s179, %s181
      %p188 = scmp.eq.s32.totalorder %s20, 1
      %p189 = por %p187, %p188
      %p190 = scmp.ne.s32.totalorder %s181, %s182
      %p191 = scmp.eq.s32.totalorder %s20, 0
      %p192 = por %p190, %p191
      %p193 = scmp.ne.s32.totalorder %s181, %s182
      %p194 = scmp.eq.s32.totalorder %s21, 1
      %p195 = por %p193, %p194
      %p197 = scmp.ne.s32.totalorder %s182, %s196
      %p198 = scmp.eq.s32.totalorder %s21, 0
      %p199 = por %p197, %p198
      %s201 = sadd.s32 %s200, 1
      %p204 = scmp.eq.s32.totalorder %s15, 1
      %p205 = scmp.ne.s32.totalorder %s200, %s202
      %p206 = scmp.eq.s32.totalorder %s15, 0
      %p207 = por %p205, %p206
      %p208 = scmp.ne.s32.totalorder %s200, %s202
      %p209 = scmp.eq.s32.totalorder %s20, 1
      %p210 = por %p208, %p209
      %p211 = scmp.ne.s32.totalorder %s202, %s203
      %p212 = scmp.eq.s32.totalorder %s20, 0
      %p213 = por %p211, %p212
      %p214 = scmp.ne.s32.totalorder %s202, %s203
      %p215 = scmp.eq.s32.totalorder %s21, 1
      %p216 = por %p214, %p215
      %p218 = scmp.ne.s32.totalorder %s203, %s217
      %p219 = scmp.eq.s32.totalorder %s21, 0
      %p220 = por %p218, %p219
      %p221 = scmp.le.s32.totalorder 1, %s15
      %p222 = scmp.lt.s32.totalorder %s15, 3
      %p223 = pnand %p221, %p222
      %p224 = pneg %p223
      // Predicated region
      $region9: #{tpu_custom_call.1} parent=5 // pred_check
        _
      $region10: #{tpu_custom_call.1} parent=5 // pred_check_branch
        %226 = sbr.rel (%p223) target = $region12
      $region11: #{tpu_custom_call.1} parent=5 // pred_region
        %s227 = ssub.s32 %s15, 1
        // Predicated region
        $region13: #{tpu_custom_call.1} parent=11 // pred_check
          %p228 = pneg %p192
        $region14: #{tpu_custom_call.1} parent=11 // pred_check_branch
          %230 = sbr.rel (%p228) target = $region16
        $region15: #{tpu_custom_call.1} parent=11 // pred_region
          %s232 = ssub.s32 16, 16
          %233 = vsyncadd [#allocation7], %s232
          %s235 = sshll.u32 %s6, 4
          %s236 = int_to_ptr.vmem [resolvable:$true] %s235
          %238 = dma.vmem_to_smem %s236, 16, [#allocation5], [#allocation7]
        $region16: #{tpu_custom_call.1} parent=11 // pred_fallthru
          _
      $region12: #{tpu_custom_call.1} parent=5 // pred_fallthru
        _
      %p239 = scmp.lt.s32.totalorder %s15, 2
      // Predicated region
      $region17: #{tpu_custom_call.1} parent=5 // pred_check
        %p240 = pneg %p239
      $region18: #{tpu_custom_call.1} parent=5 // pred_check_branch
        %242 = sbr.rel (%p240) target = $region20
      $region19: #{tpu_custom_call.1} parent=5 // pred_region
        // Predicated region
        $region21: #{tpu_custom_call.1} parent=19 // pred_check
          %p243 = pneg %p35
        $region22: #{tpu_custom_call.1} parent=19 // pred_check_branch
          %245 = sbr.rel (%p243) target = $region24
        $region23: #{tpu_custom_call.1} parent=19 // pred_region
          %s246 = smul.u32 16, %s15
          %p247 = scmp.lt.s32.totalorder %s246, 31
          %s248 = scalar_select %p247, %s246, 31
          %s249 = smul.addr %s248, 8
          %s250 = scalar_lea.vmem %s0, %s249
          %s251 = smul.u32 16, %s15
        $region24: #{tpu_custom_call.1} parent=19 // pred_fallthru
          _
        // Predicated region
        $region25: #{tpu_custom_call.1} parent=19 // pred_check
          %p252 = pneg %p61
        $region26: #{tpu_custom_call.1} parent=19 // pred_check_branch
          %254 = sbr.rel (%p252) target = $region28
        $region27: #{tpu_custom_call.1} parent=19 // pred_region
          %s255 = smul.u32 16, %s15
          %p256 = scmp.lt.s32.totalorder %s255, 31
          %s257 = scalar_select %p256, %s255, 31
          %s258 = smul.addr %s257, 8
          %s259 = scalar_lea.vmem %s1, %s258
          %s260 = smul.u32 16, %s15
        $region28: #{tpu_custom_call.1} parent=19 // pred_fallthru
          _
        // Predicated region
        $region29: #{tpu_custom_call.1} parent=19 // pred_check
          %p261 = pneg %p87
        $region30: #{tpu_custom_call.1} parent=19 // pred_check_branch
          %263 = sbr.rel (%p261) target = $region32
        $region31: #{tpu_custom_call.1} parent=19 // pred_region
          %s264 = smul.u32 16, %s15
          %p265 = scmp.lt.s32.totalorder %s264, 31
          %s266 = scalar_select %p265, %s264, 31
          %s267 = smul.addr %s266, 8
          %s268 = scalar_lea.vmem %s2, %s267
          %s269 = smul.u32 16, %s15
        $region32: #{tpu_custom_call.1} parent=19 // pred_fallthru
          _
        // Predicated region
        $region33: #{tpu_custom_call.1} parent=19 // pred_check
          %p270 = pneg %p113
        $region34: #{tpu_custom_call.1} parent=19 // pred_check_branch
          %272 = sbr.rel (%p270) target = $region36
        $region35: #{tpu_custom_call.1} parent=19 // pred_region
          %s273 = smul.u32 16, %s15
          %p274 = scmp.lt.s32.totalorder %s273, 31
          %s275 = scalar_select %p274, %s273, 31
          %s276 = smul.addr %s275, 8
          %s277 = scalar_lea.vmem %s3, %s276
          %s278 = smul.u32 16, %s15
        $region36: #{tpu_custom_call.1} parent=19 // pred_fallthru
          _
        // Predicated region
        $region37: #{tpu_custom_call.1} parent=19 // pred_check
          %p279 = pneg %p139
        $region38: #{tpu_custom_call.1} parent=19 // pred_check_branch
          %281 = sbr.rel (%p279) target = $region40
        $region39: #{tpu_custom_call.1} parent=19 // pred_region
          %s282 = smul.u32 16, %s15
          %p283 = scmp.lt.s32.totalorder %s282, 31
          %s284 = scalar_select %p283, %s282, 31
          %s285 = smul.addr %s284, 8
          %s286 = scalar_lea.vmem %s4, %s285
          %s287 = smul.u32 16, %s15
        $region40: #{tpu_custom_call.1} parent=19 // pred_fallthru
          _
        // Predicated region
        $region41: #{tpu_custom_call.1} parent=19 // pred_check
          %p288 = pneg %p165
        $region42: #{tpu_custom_call.1} parent=19 // pred_check_branch
          %290 = sbr.rel (%p288) target = $region44
        $region43: #{tpu_custom_call.1} parent=19 // pred_region
          %s291 = smul.u32 16, %s15
          %p292 = scmp.lt.s32.totalorder %s291, 31
          %s293 = scalar_select %p292, %s291, 31
          %s294 = smul.addr %s293, 8
          %s295 = scalar_lea.vmem %s5, %s294
          %s296 = smul.u32 16, %s15
        $region44: #{tpu_custom_call.1} parent=19 // pred_fallthru
          _
      $region20: #{tpu_custom_call.1} parent=5 // pred_fallthru
        _
      %p297 = scmp.le.s32.totalorder 1, %s15
      %p298 = scmp.lt.s32.totalorder %s15, 3
      %p299 = pnand %p297, %p298
      %p300 = pneg %p299
      // Predicated region
      $region45: #{tpu_custom_call.1} parent=5 // pred_check
        _
      $region46: #{tpu_custom_call.1} parent=5 // pred_check_branch
        %302 = sbr.rel (%p299) target = $region48
      $region47: #{tpu_custom_call.1} parent=5 // pred_region
        %s303 = ssub.s32 %s15, 1
        // Predicated region
        $region49: #{tpu_custom_call.1} parent=47 // pred_check
          %p304 = pneg %p192
        $region50: #{tpu_custom_call.1} parent=47 // pred_check_branch
          %306 = sbr.rel (%p304) target = $region52
        $region51: #{tpu_custom_call.1} parent=47 // pred_region
          %307 = dma.done [#allocation7], 16
        $region52: #{tpu_custom_call.1} parent=47 // pred_fallthru
          _
        %308 = sfence
        %s309 = smul.u32 16, %s20
        %p310 = scmp.lt.s32.totalorder %s309, 31
        %s311 = scalar_select %p310, %s309, 31
        %s312 = smul.addr %s311, 8
        %s313 = scalar_lea.vmem %s0, %s312
        %p314 = pneg %p41
        %p315 = pneg %p38
        %s316 = smul.u32 16, %s20
        %p317 = scmp.lt.s32.totalorder %s316, 31
        %s318 = scalar_select %p317, %s316, 31
        %s319 = smul.addr %s318, 8
        %s320 = scalar_lea.vmem %s1, %s319
        %p321 = pneg %p67
        %p322 = pneg %p64
        %s323 = smul.u32 16, %s20
        %p324 = scmp.lt.s32.totalorder %s323, 31
        %s325 = scalar_select %p324, %s323, 31
        %s326 = smul.addr %s325, 8
        %s327 = scalar_lea.vmem %s2, %s326
        %p328 = pneg %p93
        %p329 = pneg %p90
        %s330 = smul.u32 16, %s20
        %p331 = scmp.lt.s32.totalorder %s330, 31
        %s332 = scalar_select %p331, %s330, 31
        %s333 = smul.addr %s332, 8
        %s334 = scalar_lea.vmem %s3, %s333
        %p335 = pneg %p119
        %p336 = pneg %p116
        %s337 = smul.u32 16, %s20
        %p338 = scmp.lt.s32.totalorder %s337, 31
        %s339 = scalar_select %p338, %s337, 31
        %s340 = smul.addr %s339, 8
        %s341 = scalar_lea.vmem %s4, %s340
        %p342 = pneg %p145
        %p343 = pneg %p142
        %s344 = smul.u32 16, %s20
        %p345 = scmp.lt.s32.totalorder %s344, 31
        %s346 = scalar_select %p345, %s344, 31
        %s347 = smul.addr %s346, 8
        %s348 = scalar_lea.vmem %s5, %s347
        %p349 = pneg %p171
        %p350 = pneg %p168
        %p351 = pneg %p192
        %p352 = pneg %p189
        %p353 = pneg %p213
        %p354 = pneg %p210
        %s355 = smul.u32 16, %s20
        %p356 = scmp.lt.s32.totalorder %s355, 31
        %s357 = scalar_select %p356, %s355, 31
        %s358 = smul.addr %s357, 8
        %s359 = scalar_lea.vmem %s0, %s358
        %s360 = smul.u32 16, %s20
        %s361 = smul.u32 16, %s20
        %p362 = scmp.lt.s32.totalorder %s361, 31
        %s363 = scalar_select %p362, %s361, 31
        %s364 = smul.addr %s363, 8
        %s365 = scalar_lea.vmem %s1, %s364
        %s366 = smul.u32 16, %s20
        %s367 = smul.u32 16, %s20
        %p368 = scmp.lt.s32.totalorder %s367, 31
        %s369 = scalar_select %p368, %s367, 31
        %s370 = smul.addr %s369, 8
        %s371 = scalar_lea.vmem %s2, %s370
        %s372 = smul.u32 16, %s20
        %s373 = smul.u32 16, %s20
        %p374 = scmp.lt.s32.totalorder %s373, 31
        %s375 = scalar_select %p374, %s373, 31
        %s376 = smul.addr %s375, 8
        %s377 = scalar_lea.vmem %s3, %s376
        %s378 = smul.u32 16, %s20
        %s379 = smul.u32 16, %s20
        %p380 = scmp.lt.s32.totalorder %s379, 31
        %s381 = scalar_select %p380, %s379, 31
        %s382 = smul.addr %s381, 8
        %s383 = scalar_lea.vmem %s4, %s382
        %s384 = smul.u32 16, %s20
        %s385 = smul.u32 16, %s20
        %p386 = scmp.lt.s32.totalorder %s385, 31
        %s387 = scalar_select %p386, %s385, 31
        %s388 = smul.addr %s387, 8
        %s389 = scalar_lea.vmem %s5, %s388
        %s390 = smul.u32 16, %s20
        %p391 = scmp.eq.s32.totalorder %s20, 0
        // Predicated region
        $region53: #{tpu_custom_call.1} parent=47 // pred_check
          %p392 = pneg %p391
        $region54: #{tpu_custom_call.1} parent=47 // pred_check_branch
          %394 = sbr.rel (%p392) target = $region56
        $region55: #{tpu_custom_call.1} parent=47 // pred_region
          %vm395 = vcmask 130048
          %396 = vst.msk [vmem:[#allocation2] sm:$0xff] %vm395, 0.0
          %397 = vst.msk [vmem:[#allocation2 + $0x8] sm:$0xff] %vm395, 0.0
          %398 = vst.msk [vmem:[#allocation2 + $0x10] sm:$0xff] %vm395, 0.0
          %399 = vst.msk [vmem:[#allocation2 + $0x18] sm:$0xff] %vm395, 0.0
          %400 = vst.msk [vmem:[#allocation2 + $0x20] sm:$0xff] %vm395, 0.0
          %401 = vst.msk [vmem:[#allocation2 + $0x28] sm:$0xff] %vm395, 0.0
          %402 = vst.msk [vmem:[#allocation2 + $0x30] sm:$0xff] %vm395, 0.0
          %403 = vst.msk [vmem:[#allocation2 + $0x38] sm:$0xff] %vm395, 0.0
          %404 = vst.msk [vmem:[#allocation2 + $0x40] sm:$0xff] %vm395, 0.0
          %405 = vst.msk [vmem:[#allocation2 + $0x48] sm:$0xff] %vm395, 0.0
          %406 = vst.msk [vmem:[#allocation2 + $0x50] sm:$0xff] %vm395, 0.0
          %407 = vst.msk [vmem:[#allocation2 + $0x58] sm:$0xff] %vm395, 0.0
          %408 = vst.msk [vmem:[#allocation2 + $0x60] sm:$0xff] %vm395, 0.0
          %409 = vst.msk [vmem:[#allocation2 + $0x68] sm:$0xff] %vm395, 0.0
          %410 = vst.msk [vmem:[#allocation2 + $0x70] sm:$0xff] %vm395, 0.0
          %411 = vst.msk [vmem:[#allocation2 + $0x78] sm:$0xff] %vm395, 0.0
          %vm412 = vcmask 261120
          %413 = vst.msk [vmem:[#allocation3] sm:$0xff] %vm412, 0.0
          %414 = vst.msk [vmem:[#allocation3 + $0x8] sm:$0xff] %vm412, 0.0
          %415 = vst.msk [vmem:[#allocation3 + $0x10] sm:$0xff] %vm412, 0.0
          %416 = vst.msk [vmem:[#allocation3 + $0x18] sm:$0xff] %vm412, 0.0
          %417 = vst.msk [vmem:[#allocation3 + $0x20] sm:$0xff] %vm412, 0.0
          %418 = vst.msk [vmem:[#allocation3 + $0x28] sm:$0xff] %vm412, 0.0
          %419 = vst.msk [vmem:[#allocation3 + $0x30] sm:$0xff] %vm412, 0.0
          %420 = vst.msk [vmem:[#allocation3 + $0x38] sm:$0xff] %vm412, 0.0
          %421 = vst.msk [vmem:[#allocation3 + $0x40] sm:$0xff] %vm412, 0.0
          %422 = vst.msk [vmem:[#allocation3 + $0x48] sm:$0xff] %vm412, 0.0
          %423 = vst.msk [vmem:[#allocation3 + $0x50] sm:$0xff] %vm412, 0.0
          %424 = vst.msk [vmem:[#allocation3 + $0x58] sm:$0xff] %vm412, 0.0
          %425 = vst.msk [vmem:[#allocation3 + $0x60] sm:$0xff] %vm412, 0.0
          %426 = vst.msk [vmem:[#allocation3 + $0x68] sm:$0xff] %vm412, 0.0
          %427 = vst.msk [vmem:[#allocation3 + $0x70] sm:$0xff] %vm412, 0.0
          %428 = vst.msk [vmem:[#allocation3 + $0x78] sm:$0xff] %vm412, 0.0
          %429 = vst.msk [vmem:[#allocation4] sm:$0xff] %vm412, 0.0
          %430 = vst.msk [vmem:[#allocation4 + $0x8] sm:$0xff] %vm412, 0.0
          %431 = vst.msk [vmem:[#allocation4 + $0x10] sm:$0xff] %vm412, 0.0
          %432 = vst.msk [vmem:[#allocation4 + $0x18] sm:$0xff] %vm412, 0.0
          %433 = vst.msk [vmem:[#allocation4 + $0x20] sm:$0xff] %vm412, 0.0
          %434 = vst.msk [vmem:[#allocation4 + $0x28] sm:$0xff] %vm412, 0.0
          %435 = vst.msk [vmem:[#allocation4 + $0x30] sm:$0xff] %vm412, 0.0
          %436 = vst.msk [vmem:[#allocation4 + $0x38] sm:$0xff] %vm412, 0.0
          %437 = vst.msk [vmem:[#allocation4 + $0x40] sm:$0xff] %vm412, 0.0
          %438 = vst.msk [vmem:[#allocation4 + $0x48] sm:$0xff] %vm412, 0.0
          %439 = vst.msk [vmem:[#allocation4 + $0x50] sm:$0xff] %vm412, 0.0
          %440 = vst.msk [vmem:[#allocation4 + $0x58] sm:$0xff] %vm412, 0.0
          %441 = vst.msk [vmem:[#allocation4 + $0x60] sm:$0xff] %vm412, 0.0
          %442 = vst.msk [vmem:[#allocation4 + $0x68] sm:$0xff] %vm412, 0.0
          %443 = vst.msk [vmem:[#allocation4 + $0x70] sm:$0xff] %vm412, 0.0
          %444 = vst.msk [vmem:[#allocation4 + $0x78] sm:$0xff] %vm412, 0.0
        $region56: #{tpu_custom_call.1} parent=47 // pred_fallthru
          _
        %s445 = smul.u32 %s20, 128
        %v446 = vlaneseq
        %v447 = vshrl.u32 %v446, 7
        %v448 = vadd.s32 %v447, 8
        %v449 = vadd.s32 %v447, 16
        %v450 = vadd.s32 %v447, 24
        %v451 = vadd.s32 %v447, 32
        %v452 = vadd.s32 %v447, 40
        %v453 = vadd.s32 %v447, 48
        %v454 = vadd.s32 %v447, 56
        %v455 = vadd.s32 %v447, 64
        %v456 = vadd.s32 %v447, 72
        %v457 = vadd.s32 %v447, 80
        %v458 = vadd.s32 %v447, 88
        %v459 = vadd.s32 %v447, 96
        %v460 = vadd.s32 %v447, 104
        %v461 = vadd.s32 %v447, 112
        %v462 = vadd.s32 %v447, 120
        %v463 = vstv %s445
        %v464 = vadd.s32 %v463, %v447
        %v465 = vadd.s32 %v463, %v448
        %v466 = vadd.s32 %v463, %v449
        %v467 = vadd.s32 %v463, %v450
        %v468 = vadd.s32 %v463, %v451
        %v469 = vadd.s32 %v463, %v452
        %v470 = vadd.s32 %v463, %v453
        %v471 = vadd.s32 %v463, %v454
        %v472 = vadd.s32 %v463, %v455
        %v473 = vadd.s32 %v463, %v456
        %v474 = vadd.s32 %v463, %v457
        %v475 = vadd.s32 %v463, %v458
        %v476 = vadd.s32 %v463, %v459
        %v477 = vadd.s32 %v463, %v460
        %v478 = vadd.s32 %v463, %v461
        %v479 = vadd.s32 %v463, %v462
        %vm480 = vcmp.lt.s32.totalorder %v464, 256
        %vm481 = vcmp.lt.s32.totalorder %v465, 256
        %vm482 = vcmp.lt.s32.totalorder %v466, 256
        %vm483 = vcmp.lt.s32.totalorder %v467, 256
        %vm484 = vcmp.lt.s32.totalorder %v468, 256
        %vm485 = vcmp.lt.s32.totalorder %v469, 256
        %vm486 = vcmp.lt.s32.totalorder %v470, 256
        %vm487 = vcmp.lt.s32.totalorder %v471, 256
        %vm488 = vcmp.lt.s32.totalorder %v472, 256
        %vm489 = vcmp.lt.s32.totalorder %v473, 256
        %vm490 = vcmp.lt.s32.totalorder %v474, 256
        %vm491 = vcmp.lt.s32.totalorder %v475, 256
        %vm492 = vcmp.lt.s32.totalorder %v476, 256
        %vm493 = vcmp.lt.s32.totalorder %v477, 256
        %vm494 = vcmp.lt.s32.totalorder %v478, 256
        %vm495 = vcmp.lt.s32.totalorder %v479, 256
        %v496 = vld [vmem:[%s359] sm:$0xff]
        %v497 = vld [vmem:[%s359 + $0x8] sm:$0xff]
        %v498 = vld [vmem:[%s359 + $0x10] sm:$0xff]
        %v499 = vld [vmem:[%s359 + $0x18] sm:$0xff]
        %v500 = vld [vmem:[%s359 + $0x20] sm:$0xff]
        %v501 = vld [vmem:[%s359 + $0x28] sm:$0xff]
        %v502 = vld [vmem:[%s359 + $0x30] sm:$0xff]
        %v503 = vld [vmem:[%s359 + $0x38] sm:$0xff]
        %v504 = vld [vmem:[%s359 + $0x40] sm:$0xff]
        %v505 = vld [vmem:[%s359 + $0x48] sm:$0xff]
        %v506 = vld [vmem:[%s359 + $0x50] sm:$0xff]
        %v507 = vld [vmem:[%s359 + $0x58] sm:$0xff]
        %v508 = vld [vmem:[%s359 + $0x60] sm:$0xff]
        %v509 = vld [vmem:[%s359 + $0x68] sm:$0xff]
        %v510 = vld [vmem:[%s359 + $0x70] sm:$0xff]
        %v511 = vld [vmem:[%s359 + $0x78] sm:$0xff]
        %v512 = vld [vmem:[%s365] sm:$0xff]
        %v513 = vld [vmem:[%s365 + $0x8] sm:$0xff]
        %v514 = vld [vmem:[%s365 + $0x10] sm:$0xff]
        %v515 = vld [vmem:[%s365 + $0x18] sm:$0xff]
        %v516 = vld [vmem:[%s365 + $0x20] sm:$0xff]
        %v517 = vld [vmem:[%s365 + $0x28] sm:$0xff]
        %v518 = vld [vmem:[%s365 + $0x30] sm:$0xff]
        %v519 = vld [vmem:[%s365 + $0x38] sm:$0xff]
        %v520 = vld [vmem:[%s365 + $0x40] sm:$0xff]
        %v521 = vld [vmem:[%s365 + $0x48] sm:$0xff]
        %v522 = vld [vmem:[%s365 + $0x50] sm:$0xff]
        %v523 = vld [vmem:[%s365 + $0x58] sm:$0xff]
        %v524 = vld [vmem:[%s365 + $0x60] sm:$0xff]
        %v525 = vld [vmem:[%s365 + $0x68] sm:$0xff]
        %v526 = vld [vmem:[%s365 + $0x70] sm:$0xff]
        %v527 = vld [vmem:[%s365 + $0x78] sm:$0xff]
        %v528 = vlaneseq
        %v529 = vand.u32 %v528, 127
        %530 = vset.pattern.permute.xlu0 0
        %531 = vperm.xlu0 %530, %v512
        %v532 = vpop.permute.xlu0 %531
        %533 = vset.pattern.permute.xlu0 0
        %534 = vperm.xlu0 %533, %v513
        %v535 = vpop.permute.xlu0 %534
        %536 = vset.pattern.permute.xlu0 0
        %537 = vperm.xlu0 %536, %v514
        %v538 = vpop.permute.xlu0 %537
        %539 = vset.pattern.permute.xlu0 0
        %540 = vperm.xlu0 %539, %v515
        %v541 = vpop.permute.xlu0 %540
        %542 = vset.pattern.permute.xlu0 0
        %543 = vperm.xlu0 %542, %v516
        %v544 = vpop.permute.xlu0 %543
        %545 = vset.pattern.permute.xlu0 0
        %546 = vperm.xlu0 %545, %v517
        %v547 = vpop.permute.xlu0 %546
        %548 = vset.pattern.permute.xlu0 0
        %549 = vperm.xlu0 %548, %v518
        %v550 = vpop.permute.xlu0 %549
        %551 = vset.pattern.permute.xlu0 0
        %552 = vperm.xlu0 %551, %v519
        %v553 = vpop.permute.xlu0 %552
        %554 = vset.pattern.permute.xlu0 0
        %555 = vperm.xlu0 %554, %v520
        %v556 = vpop.permute.xlu0 %555
        %557 = vset.pattern.permute.xlu0 0
        %558 = vperm.xlu0 %557, %v521
        %v559 = vpop.permute.xlu0 %558
        %560 = vset.pattern.permute.xlu0 0
        %561 = vperm.xlu0 %560, %v522
        %v562 = vpop.permute.xlu0 %561
        %563 = vset.pattern.permute.xlu0 0
        %564 = vperm.xlu0 %563, %v523
        %v565 = vpop.permute.xlu0 %564
        %566 = vset.pattern.permute.xlu0 0
        %567 = vperm.xlu0 %566, %v524
        %v568 = vpop.permute.xlu0 %567
        %569 = vset.pattern.permute.xlu0 0
        %570 = vperm.xlu0 %569, %v525
        %v571 = vpop.permute.xlu0 %570
        %572 = vset.pattern.permute.xlu0 0
        %573 = vperm.xlu0 %572, %v526
        %v574 = vpop.permute.xlu0 %573
        %575 = vset.pattern.permute.xlu0 0
        %576 = vperm.xlu0 %575, %v527
        %v577 = vpop.permute.xlu0 %576
        %vm578 = vcmp.eq.s32.totalorder %v529, %v532
        %vm579 = vcmp.eq.s32.totalorder %v529, %v535
        %vm580 = vcmp.eq.s32.totalorder %v529, %v538
        %vm581 = vcmp.eq.s32.totalorder %v529, %v541
        %vm582 = vcmp.eq.s32.totalorder %v529, %v544
        %vm583 = vcmp.eq.s32.totalorder %v529, %v547
        %vm584 = vcmp.eq.s32.totalorder %v529, %v550
        %vm585 = vcmp.eq.s32.totalorder %v529, %v553
        %vm586 = vcmp.eq.s32.totalorder %v529, %v556
        %vm587 = vcmp.eq.s32.totalorder %v529, %v559
        %vm588 = vcmp.eq.s32.totalorder %v529, %v562
        %vm589 = vcmp.eq.s32.totalorder %v529, %v565
        %vm590 = vcmp.eq.s32.totalorder %v529, %v568
        %vm591 = vcmp.eq.s32.totalorder %v529, %v571
        %vm592 = vcmp.eq.s32.totalorder %v529, %v574
        %vm593 = vcmp.eq.s32.totalorder %v529, %v577
        %v594 = vsel %vm480, 1, 0
        %v595 = vsel %vm481, 1, 0
        %v596 = vsel %vm482, 1, 0
        %v597 = vsel %vm483, 1, 0
        %v598 = vsel %vm484, 1, 0
        %v599 = vsel %vm485, 1, 0
        %v600 = vsel %vm486, 1, 0
        %v601 = vsel %vm487, 1, 0
        %v602 = vsel %vm488, 1, 0
        %v603 = vsel %vm489, 1, 0
        %v604 = vsel %vm490, 1, 0
        %v605 = vsel %vm491, 1, 0
        %v606 = vsel %vm492, 1, 0
        %v607 = vsel %vm493, 1, 0
        %v608 = vsel %vm494, 1, 0
        %v609 = vsel %vm495, 1, 0
        %vm610 = vcmp.eq.s32.totalorder %v594, 1
        %vm611 = vcmp.eq.s32.totalorder %v595, 1
        %vm612 = vcmp.eq.s32.totalorder %v596, 1
        %vm613 = vcmp.eq.s32.totalorder %v597, 1
        %vm614 = vcmp.eq.s32.totalorder %v598, 1
        %vm615 = vcmp.eq.s32.totalorder %v599, 1
        %vm616 = vcmp.eq.s32.totalorder %v600, 1
        %vm617 = vcmp.eq.s32.totalorder %v601, 1
        %vm618 = vcmp.eq.s32.totalorder %v602, 1
        %vm619 = vcmp.eq.s32.totalorder %v603, 1
        %vm620 = vcmp.eq.s32.totalorder %v604, 1
        %vm621 = vcmp.eq.s32.totalorder %v605, 1
        %vm622 = vcmp.eq.s32.totalorder %v606, 1
        %vm623 = vcmp.eq.s32.totalorder %v607, 1
        %vm624 = vcmp.eq.s32.totalorder %v608, 1
        %vm625 = vcmp.eq.s32.totalorder %v609, 1
        %vm626 = vmand %vm610, %vm578
        %vm627 = vmand %vm611, %vm579
        %vm628 = vmand %vm612, %vm580
        %vm629 = vmand %vm613, %vm581
        %vm630 = vmand %vm614, %vm582
        %vm631 = vmand %vm615, %vm583
        %vm632 = vmand %vm616, %vm584
        %vm633 = vmand %vm617, %vm585
        %vm634 = vmand %vm618, %vm586
        %vm635 = vmand %vm619, %vm587
        %vm636 = vmand %vm620, %vm588
        %vm637 = vmand %vm621, %vm589
        %vm638 = vmand %vm622, %vm590
        %vm639 = vmand %vm623, %vm591
        %vm640 = vmand %vm624, %vm592
        %vm641 = vmand %vm625, %vm593
        %v642 = vsel %vm626, %v496, 0.0
        %v643 = vsel %vm627, %v497, 0.0
        %v644 = vsel %vm628, %v498, 0.0
        %v645 = vsel %vm629, %v499, 0.0
        %v646 = vsel %vm630, %v500, 0.0
        %v647 = vsel %vm631, %v501, 0.0
        %v648 = vsel %vm632, %v502, 0.0
        %v649 = vsel %vm633, %v503, 0.0
        %v650 = vsel %vm634, %v504, 0.0
        %v651 = vsel %vm635, %v505, 0.0
        %v652 = vsel %vm636, %v506, 0.0
        %v653 = vsel %vm637, %v507, 0.0
        %v654 = vsel %vm638, %v508, 0.0
        %v655 = vsel %vm639, %v509, 0.0
        %v656 = vsel %vm640, %v510, 0.0
        %v657 = vsel %vm641, %v511, 0.0
        %v658 = vld [vmem:[#allocation2] sm:$0xff]
        %v659 = vld [vmem:[#allocation2 + $0x8] sm:$0xff]
        %v660 = vld [vmem:[#allocation2 + $0x10] sm:$0xff]
        %v661 = vld [vmem:[#allocation2 + $0x18] sm:$0xff]
        %v662 = vld [vmem:[#allocation2 + $0x20] sm:$0xff]
        %v663 = vld [vmem:[#allocation2 + $0x28] sm:$0xff]
        %v664 = vld [vmem:[#allocation2 + $0x30] sm:$0xff]
        %v665 = vld [vmem:[#allocation2 + $0x38] sm:$0xff]
        %v666 = vld [vmem:[#allocation2 + $0x40] sm:$0xff]
        %v667 = vld [vmem:[#allocation2 + $0x48] sm:$0xff]
        %v668 = vld [vmem:[#allocation2 + $0x50] sm:$0xff]
        %v669 = vld [vmem:[#allocation2 + $0x58] sm:$0xff]
        %v670 = vld [vmem:[#allocation2 + $0x60] sm:$0xff]
        %v671 = vld [vmem:[#allocation2 + $0x68] sm:$0xff]
        %v672 = vld [vmem:[#allocation2 + $0x70] sm:$0xff]
        %v673 = vld [vmem:[#allocation2 + $0x78] sm:$0xff]
        %v674 = vadd.f32 %v658, %v642
        %v675 = vadd.f32 %v659, %v643
        %v676 = vadd.f32 %v660, %v644
        %v677 = vadd.f32 %v661, %v645
        %v678 = vadd.f32 %v662, %v646
        %v679 = vadd.f32 %v663, %v647
        %v680 = vadd.f32 %v664, %v648
        %v681 = vadd.f32 %v665, %v649
        %v682 = vadd.f32 %v666, %v650
        %v683 = vadd.f32 %v667, %v651
        %v684 = vadd.f32 %v668, %v652
        %v685 = vadd.f32 %v669, %v653
        %v686 = vadd.f32 %v670, %v654
        %v687 = vadd.f32 %v671, %v655
        %v688 = vadd.f32 %v672, %v656
        %v689 = vadd.f32 %v673, %v657
        %vm690 = vcmask 130048
        %691 = vst.msk [vmem:[#allocation2] sm:$0xff] %vm690, %v674
        %692 = vst.msk [vmem:[#allocation2 + $0x8] sm:$0xff] %vm690, %v675
        %693 = vst.msk [vmem:[#allocation2 + $0x10] sm:$0xff] %vm690, %v676
        %694 = vst.msk [vmem:[#allocation2 + $0x18] sm:$0xff] %vm690, %v677
        %695 = vst.msk [vmem:[#allocation2 + $0x20] sm:$0xff] %vm690, %v678
        %696 = vst.msk [vmem:[#allocation2 + $0x28] sm:$0xff] %vm690, %v679
        %697 = vst.msk [vmem:[#allocation2 + $0x30] sm:$0xff] %vm690, %v680
        %698 = vst.msk [vmem:[#allocation2 + $0x38] sm:$0xff] %vm690, %v681
        %699 = vst.msk [vmem:[#allocation2 + $0x40] sm:$0xff] %vm690, %v682
        %700 = vst.msk [vmem:[#allocation2 + $0x48] sm:$0xff] %vm690, %v683
        %701 = vst.msk [vmem:[#allocation2 + $0x50] sm:$0xff] %vm690, %v684
        %702 = vst.msk [vmem:[#allocation2 + $0x58] sm:$0xff] %vm690, %v685
        %703 = vst.msk [vmem:[#allocation2 + $0x60] sm:$0xff] %vm690, %v686
        %704 = vst.msk [vmem:[#allocation2 + $0x68] sm:$0xff] %vm690, %v687
        %705 = vst.msk [vmem:[#allocation2 + $0x70] sm:$0xff] %vm690, %v688
        %706 = vst.msk [vmem:[#allocation2 + $0x78] sm:$0xff] %vm690, %v689
        %v707 = vld [vmem:[%s371] sm:$0xff]
        %v708 = vld [vmem:[%s371 + $0x8] sm:$0xff]
        %v709 = vld [vmem:[%s371 + $0x10] sm:$0xff]
        %v710 = vld [vmem:[%s371 + $0x18] sm:$0xff]
        %v711 = vld [vmem:[%s371 + $0x20] sm:$0xff]
        %v712 = vld [vmem:[%s371 + $0x28] sm:$0xff]
        %v713 = vld [vmem:[%s371 + $0x30] sm:$0xff]
        %v714 = vld [vmem:[%s371 + $0x38] sm:$0xff]
        %v715 = vld [vmem:[%s371 + $0x40] sm:$0xff]
        %v716 = vld [vmem:[%s371 + $0x48] sm:$0xff]
        %v717 = vld [vmem:[%s371 + $0x50] sm:$0xff]
        %v718 = vld [vmem:[%s371 + $0x58] sm:$0xff]
        %v719 = vld [vmem:[%s371 + $0x60] sm:$0xff]
        %v720 = vld [vmem:[%s371 + $0x68] sm:$0xff]
        %v721 = vld [vmem:[%s371 + $0x70] sm:$0xff]
        %v722 = vld [vmem:[%s371 + $0x78] sm:$0xff]
        %v723 = vld [vmem:[%s377] sm:$0xff]
        %v724 = vld [vmem:[%s377 + $0x8] sm:$0xff]
        %v725 = vld [vmem:[%s377 + $0x10] sm:$0xff]
        %v726 = vld [vmem:[%s377 + $0x18] sm:$0xff]
        %v727 = vld [vmem:[%s377 + $0x20] sm:$0xff]
        %v728 = vld [vmem:[%s377 + $0x28] sm:$0xff]
        %v729 = vld [vmem:[%s377 + $0x30] sm:$0xff]
        %v730 = vld [vmem:[%s377 + $0x38] sm:$0xff]
        %v731 = vld [vmem:[%s377 + $0x40] sm:$0xff]
        %v732 = vld [vmem:[%s377 + $0x48] sm:$0xff]
        %v733 = vld [vmem:[%s377 + $0x50] sm:$0xff]
        %v734 = vld [vmem:[%s377 + $0x58] sm:$0xff]
        %v735 = vld [vmem:[%s377 + $0x60] sm:$0xff]
        %v736 = vld [vmem:[%s377 + $0x68] sm:$0xff]
        %v737 = vld [vmem:[%s377 + $0x70] sm:$0xff]
        %v738 = vld [vmem:[%s377 + $0x78] sm:$0xff]
        %v739 = vsub.f32 %v707, %v723
        %v740 = vsub.f32 %v708, %v724
        %v741 = vsub.f32 %v709, %v725
        %v742 = vsub.f32 %v710, %v726
        %v743 = vsub.f32 %v711, %v727
        %v744 = vsub.f32 %v712, %v728
        %v745 = vsub.f32 %v713, %v729
        %v746 = vsub.f32 %v714, %v730
        %v747 = vsub.f32 %v715, %v731
        %v748 = vsub.f32 %v716, %v732
        %v749 = vsub.f32 %v717, %v733
        %v750 = vsub.f32 %v718, %v734
        %v751 = vsub.f32 %v719, %v735
        %v752 = vsub.f32 %v720, %v736
        %v753 = vsub.f32 %v721, %v737
        %v754 = vsub.f32 %v722, %v738
        %v755 = vld [vmem:[#allocation3] sm:$0xff]
        %v756 = vld [vmem:[#allocation3 + $0x8] sm:$0xff]
        %v757 = vld [vmem:[#allocation3 + $0x10] sm:$0xff]
        %v758 = vld [vmem:[#allocation3 + $0x18] sm:$0xff]
        %v759 = vld [vmem:[#allocation3 + $0x20] sm:$0xff]
        %v760 = vld [vmem:[#allocation3 + $0x28] sm:$0xff]
        %v761 = vld [vmem:[#allocation3 + $0x30] sm:$0xff]
        %v762 = vld [vmem:[#allocation3 + $0x38] sm:$0xff]
        %v763 = vld [vmem:[#allocation3 + $0x40] sm:$0xff]
        %v764 = vld [vmem:[#allocation3 + $0x48] sm:$0xff]
        %v765 = vld [vmem:[#allocation3 + $0x50] sm:$0xff]
        %v766 = vld [vmem:[#allocation3 + $0x58] sm:$0xff]
        %v767 = vld [vmem:[#allocation3 + $0x60] sm:$0xff]
        %v768 = vld [vmem:[#allocation3 + $0x68] sm:$0xff]
        %v769 = vld [vmem:[#allocation3 + $0x70] sm:$0xff]
        %v770 = vld [vmem:[#allocation3 + $0x78] sm:$0xff]
        %v771 = vmul.f32 %v739, %v739
        %v772 = vmul.f32 %v740, %v740
        %v773 = vmul.f32 %v741, %v741
        %v774 = vmul.f32 %v742, %v742
        %v775 = vmul.f32 %v743, %v743
        %v776 = vmul.f32 %v744, %v744
        %v777 = vmul.f32 %v745, %v745
        %v778 = vmul.f32 %v746, %v746
        %v779 = vmul.f32 %v747, %v747
        %v780 = vmul.f32 %v748, %v748
        %v781 = vmul.f32 %v749, %v749
        %v782 = vmul.f32 %v750, %v750
        %v783 = vmul.f32 %v751, %v751
        %v784 = vmul.f32 %v752, %v752
        %v785 = vmul.f32 %v753, %v753
        %v786 = vmul.f32 %v754, %v754
        %v787 = vsel %vm610, %v771, 0.0
        %v788 = vsel %vm611, %v772, 0.0
        %v789 = vsel %vm612, %v773, 0.0
        %v790 = vsel %vm613, %v774, 0.0
        %v791 = vsel %vm614, %v775, 0.0
        %v792 = vsel %vm615, %v776, 0.0
        %v793 = vsel %vm616, %v777, 0.0
        %v794 = vsel %vm617, %v778, 0.0
        %v795 = vsel %vm618, %v779, 0.0
        %v796 = vsel %vm619, %v780, 0.0
        %v797 = vsel %vm620, %v781, 0.0
        %v798 = vsel %vm621, %v782, 0.0
        %v799 = vsel %vm622, %v783, 0.0
        %v800 = vsel %vm623, %v784, 0.0
        %v801 = vsel %vm624, %v785, 0.0
        %v802 = vsel %vm625, %v786, 0.0
        %v803 = vadd.f32 %v755, %v787
        %v804 = vadd.f32 %v756, %v788
        %v805 = vadd.f32 %v757, %v789
        %v806 = vadd.f32 %v758, %v790
        %v807 = vadd.f32 %v759, %v791
        %v808 = vadd.f32 %v760, %v792
        %v809 = vadd.f32 %v761, %v793
        %v810 = vadd.f32 %v762, %v794
        %v811 = vadd.f32 %v763, %v795
        %v812 = vadd.f32 %v764, %v796
        %v813 = vadd.f32 %v765, %v797
        %v814 = vadd.f32 %v766, %v798
        %v815 = vadd.f32 %v767, %v799
        %v816 = vadd.f32 %v768, %v800
        %v817 = vadd.f32 %v769, %v801
        %v818 = vadd.f32 %v770, %v802
        %vm819 = vcmask 261120
        %820 = vst.msk [vmem:[#allocation3] sm:$0xff] %vm819, %v803
        %821 = vst.msk [vmem:[#allocation3 + $0x8] sm:$0xff] %vm819, %v804
        %822 = vst.msk [vmem:[#allocation3 + $0x10] sm:$0xff] %vm819, %v805
        %823 = vst.msk [vmem:[#allocation3 + $0x18] sm:$0xff] %vm819, %v806
        %824 = vst.msk [vmem:[#allocation3 + $0x20] sm:$0xff] %vm819, %v807
        %825 = vst.msk [vmem:[#allocation3 + $0x28] sm:$0xff] %vm819, %v808
        %826 = vst.msk [vmem:[#allocation3 + $0x30] sm:$0xff] %vm819, %v809
        %827 = vst.msk [vmem:[#allocation3 + $0x38] sm:$0xff] %vm819, %v810
        %828 = vst.msk [vmem:[#allocation3 + $0x40] sm:$0xff] %vm819, %v811
        %829 = vst.msk [vmem:[#allocation3 + $0x48] sm:$0xff] %vm819, %v812
        %830 = vst.msk [vmem:[#allocation3 + $0x50] sm:$0xff] %vm819, %v813
        %831 = vst.msk [vmem:[#allocation3 + $0x58] sm:$0xff] %vm819, %v814
        %832 = vst.msk [vmem:[#allocation3 + $0x60] sm:$0xff] %vm819, %v815
        %833 = vst.msk [vmem:[#allocation3 + $0x68] sm:$0xff] %vm819, %v816
        %834 = vst.msk [vmem:[#allocation3 + $0x70] sm:$0xff] %vm819, %v817
        %835 = vst.msk [vmem:[#allocation3 + $0x78] sm:$0xff] %vm819, %v818
        %v836 = vld [vmem:[%s383] sm:$0xff]
        %v837 = vld [vmem:[%s383 + $0x8] sm:$0xff]
        %v838 = vld [vmem:[%s383 + $0x10] sm:$0xff]
        %v839 = vld [vmem:[%s383 + $0x18] sm:$0xff]
        %v840 = vld [vmem:[%s383 + $0x20] sm:$0xff]
        %v841 = vld [vmem:[%s383 + $0x28] sm:$0xff]
        %v842 = vld [vmem:[%s383 + $0x30] sm:$0xff]
        %v843 = vld [vmem:[%s383 + $0x38] sm:$0xff]
        %v844 = vld [vmem:[%s383 + $0x40] sm:$0xff]
        %v845 = vld [vmem:[%s383 + $0x48] sm:$0xff]
        %v846 = vld [vmem:[%s383 + $0x50] sm:$0xff]
        %v847 = vld [vmem:[%s383 + $0x58] sm:$0xff]
        %v848 = vld [vmem:[%s383 + $0x60] sm:$0xff]
        %v849 = vld [vmem:[%s383 + $0x68] sm:$0xff]
        %v850 = vld [vmem:[%s383 + $0x70] sm:$0xff]
        %v851 = vld [vmem:[%s383 + $0x78] sm:$0xff]
        %v852 = vld [vmem:[%s389] sm:$0xff]
        %v853 = vld [vmem:[%s389 + $0x8] sm:$0xff]
        %v854 = vld [vmem:[%s389 + $0x10] sm:$0xff]
        %v855 = vld [vmem:[%s389 + $0x18] sm:$0xff]
        %v856 = vld [vmem:[%s389 + $0x20] sm:$0xff]
        %v857 = vld [vmem:[%s389 + $0x28] sm:$0xff]
        %v858 = vld [vmem:[%s389 + $0x30] sm:$0xff]
        %v859 = vld [vmem:[%s389 + $0x38] sm:$0xff]
        %v860 = vld [vmem:[%s389 + $0x40] sm:$0xff]
        %v861 = vld [vmem:[%s389 + $0x48] sm:$0xff]
        %v862 = vld [vmem:[%s389 + $0x50] sm:$0xff]
        %v863 = vld [vmem:[%s389 + $0x58] sm:$0xff]
        %v864 = vld [vmem:[%s389 + $0x60] sm:$0xff]
        %v865 = vld [vmem:[%s389 + $0x68] sm:$0xff]
        %v866 = vld [vmem:[%s389 + $0x70] sm:$0xff]
        %v867 = vld [vmem:[%s389 + $0x78] sm:$0xff]
        %v868 = vsub.f32 %v836, %v852
        %v869 = vsub.f32 %v837, %v853
        %v870 = vsub.f32 %v838, %v854
        %v871 = vsub.f32 %v839, %v855
        %v872 = vsub.f32 %v840, %v856
        %v873 = vsub.f32 %v841, %v857
        %v874 = vsub.f32 %v842, %v858
        %v875 = vsub.f32 %v843, %v859
        %v876 = vsub.f32 %v844, %v860
        %v877 = vsub.f32 %v845, %v861
        %v878 = vsub.f32 %v846, %v862
        %v879 = vsub.f32 %v847, %v863
        %v880 = vsub.f32 %v848, %v864
        %v881 = vsub.f32 %v849, %v865
        %v882 = vsub.f32 %v850, %v866
        %v883 = vsub.f32 %v851, %v867
        %v884 = vld [vmem:[#allocation4] sm:$0xff]
        %v885 = vld [vmem:[#allocation4 + $0x8] sm:$0xff]
        %v886 = vld [vmem:[#allocation4 + $0x10] sm:$0xff]
        %v887 = vld [vmem:[#allocation4 + $0x18] sm:$0xff]
        %v888 = vld [vmem:[#allocation4 + $0x20] sm:$0xff]
        %v889 = vld [vmem:[#allocation4 + $0x28] sm:$0xff]
        %v890 = vld [vmem:[#allocation4 + $0x30] sm:$0xff]
        %v891 = vld [vmem:[#allocation4 + $0x38] sm:$0xff]
        %v892 = vld [vmem:[#allocation4 + $0x40] sm:$0xff]
        %v893 = vld [vmem:[#allocation4 + $0x48] sm:$0xff]
        %v894 = vld [vmem:[#allocation4 + $0x50] sm:$0xff]
        %v895 = vld [vmem:[#allocation4 + $0x58] sm:$0xff]
        %v896 = vld [vmem:[#allocation4 + $0x60] sm:$0xff]
        %v897 = vld [vmem:[#allocation4 + $0x68] sm:$0xff]
        %v898 = vld [vmem:[#allocation4 + $0x70] sm:$0xff]
        %v899 = vld [vmem:[#allocation4 + $0x78] sm:$0xff]
        %v900 = vmul.f32 %v868, %v868
        %v901 = vmul.f32 %v869, %v869
        %v902 = vmul.f32 %v870, %v870
        %v903 = vmul.f32 %v871, %v871
        %v904 = vmul.f32 %v872, %v872
        %v905 = vmul.f32 %v873, %v873
        %v906 = vmul.f32 %v874, %v874
        %v907 = vmul.f32 %v875, %v875
        %v908 = vmul.f32 %v876, %v876
        %v909 = vmul.f32 %v877, %v877
        %v910 = vmul.f32 %v878, %v878
        %v911 = vmul.f32 %v879, %v879
        %v912 = vmul.f32 %v880, %v880
        %v913 = vmul.f32 %v881, %v881
        %v914 = vmul.f32 %v882, %v882
        %v915 = vmul.f32 %v883, %v883
        %v916 = vsel %vm610, %v900, 0.0
        %v917 = vsel %vm611, %v901, 0.0
        %v918 = vsel %vm612, %v902, 0.0
        %v919 = vsel %vm613, %v903, 0.0
        %v920 = vsel %vm614, %v904, 0.0
        %v921 = vsel %vm615, %v905, 0.0
        %v922 = vsel %vm616, %v906, 0.0
        %v923 = vsel %vm617, %v907, 0.0
        %v924 = vsel %vm618, %v908, 0.0
        %v925 = vsel %vm619, %v909, 0.0
        %v926 = vsel %vm620, %v910, 0.0
        %v927 = vsel %vm621, %v911, 0.0
        %v928 = vsel %vm622, %v912, 0.0
        %v929 = vsel %vm623, %v913, 0.0
        %v930 = vsel %vm624, %v914, 0.0
        %v931 = vsel %vm625, %v915, 0.0
        %v932 = vadd.f32 %v884, %v916
        %v933 = vadd.f32 %v885, %v917
        %v934 = vadd.f32 %v886, %v918
        %v935 = vadd.f32 %v887, %v919
        %v936 = vadd.f32 %v888, %v920
        %v937 = vadd.f32 %v889, %v921
        %v938 = vadd.f32 %v890, %v922
        %v939 = vadd.f32 %v891, %v923
        %v940 = vadd.f32 %v892, %v924
        %v941 = vadd.f32 %v893, %v925
        %v942 = vadd.f32 %v894, %v926
        %v943 = vadd.f32 %v895, %v927
        %v944 = vadd.f32 %v896, %v928
        %v945 = vadd.f32 %v897, %v929
        %v946 = vadd.f32 %v898, %v930
        %v947 = vadd.f32 %v899, %v931
        %948 = vst.msk [vmem:[#allocation4] sm:$0xff] %vm819, %v932
        %949 = vst.msk [vmem:[#allocation4 + $0x8] sm:$0xff] %vm819, %v933
        %950 = vst.msk [vmem:[#allocation4 + $0x10] sm:$0xff] %vm819, %v934
        %951 = vst.msk [vmem:[#allocation4 + $0x18] sm:$0xff] %vm819, %v935
        %952 = vst.msk [vmem:[#allocation4 + $0x20] sm:$0xff] %vm819, %v936
        %953 = vst.msk [vmem:[#allocation4 + $0x28] sm:$0xff] %vm819, %v937
        %954 = vst.msk [vmem:[#allocation4 + $0x30] sm:$0xff] %vm819, %v938
        %955 = vst.msk [vmem:[#allocation4 + $0x38] sm:$0xff] %vm819, %v939
        %956 = vst.msk [vmem:[#allocation4 + $0x40] sm:$0xff] %vm819, %v940
        %957 = vst.msk [vmem:[#allocation4 + $0x48] sm:$0xff] %vm819, %v941
        %958 = vst.msk [vmem:[#allocation4 + $0x50] sm:$0xff] %vm819, %v942
        %959 = vst.msk [vmem:[#allocation4 + $0x58] sm:$0xff] %vm819, %v943
        %960 = vst.msk [vmem:[#allocation4 + $0x60] sm:$0xff] %vm819, %v944
        %961 = vst.msk [vmem:[#allocation4 + $0x68] sm:$0xff] %vm819, %v945
        %962 = vst.msk [vmem:[#allocation4 + $0x70] sm:$0xff] %vm819, %v946
        %963 = vst.msk [vmem:[#allocation4 + $0x78] sm:$0xff] %vm819, %v947
        %p964 = scmp.eq.s32.totalorder %s20, 1
        // Predicated region
        $region57: #{tpu_custom_call.1} parent=47 // pred_check
          %p965 = pneg %p964
        $region58: #{tpu_custom_call.1} parent=47 // pred_check_branch
          %967 = sbr.rel (%p965) target = $region60
        $region59: #{tpu_custom_call.1} parent=47 // pred_region
          %v968 = vld [vmem:[#allocation2] sm:$0xff]
          %v969 = vld [vmem:[#allocation2 + $0x8] sm:$0xff]
          %v970 = vld [vmem:[#allocation2 + $0x10] sm:$0xff]
          %v971 = vld [vmem:[#allocation2 + $0x18] sm:$0xff]
          %v972 = vld [vmem:[#allocation2 + $0x20] sm:$0xff]
          %v973 = vld [vmem:[#allocation2 + $0x28] sm:$0xff]
          %v974 = vld [vmem:[#allocation2 + $0x30] sm:$0xff]
          %v975 = vld [vmem:[#allocation2 + $0x38] sm:$0xff]
          %v976 = vld [vmem:[#allocation2 + $0x40] sm:$0xff]
          %v977 = vld [vmem:[#allocation2 + $0x48] sm:$0xff]
          %v978 = vld [vmem:[#allocation2 + $0x50] sm:$0xff]
          %v979 = vld [vmem:[#allocation2 + $0x58] sm:$0xff]
          %v980 = vld [vmem:[#allocation2 + $0x60] sm:$0xff]
          %v981 = vld [vmem:[#allocation2 + $0x68] sm:$0xff]
          %v982 = vld [vmem:[#allocation2 + $0x70] sm:$0xff]
          %v983 = vld [vmem:[#allocation2 + $0x78] sm:$0xff]
          %v984 = vsel %vm690, %v968, 0.0
          %v985 = vsel %vm690, %v969, 0.0
          %v986 = vadd.f32 %v984, %v985
          %v987 = vsel %vm690, %v970, 0.0
          %v988 = vadd.f32 %v986, %v987
          %v989 = vsel %vm690, %v971, 0.0
          %v990 = vadd.f32 %v988, %v989
          %v991 = vsel %vm690, %v972, 0.0
          %v992 = vadd.f32 %v990, %v991
          %v993 = vsel %vm690, %v973, 0.0
          %v994 = vadd.f32 %v992, %v993
          %v995 = vsel %vm690, %v974, 0.0
          %v996 = vadd.f32 %v994, %v995
          %v997 = vsel %vm690, %v975, 0.0
          %v998 = vadd.f32 %v996, %v997
          %v999 = vsel %vm690, %v976, 0.0
          %v1000 = vadd.f32 %v998, %v999
          %v1001 = vsel %vm690, %v977, 0.0
          %v1002 = vadd.f32 %v1000, %v1001
          %v1003 = vsel %vm690, %v978, 0.0
          %v1004 = vadd.f32 %v1002, %v1003
          %v1005 = vsel %vm690, %v979, 0.0
          %v1006 = vadd.f32 %v1004, %v1005
          %v1007 = vsel %vm690, %v980, 0.0
          %v1008 = vadd.f32 %v1006, %v1007
          %v1009 = vsel %vm690, %v981, 0.0
          %v1010 = vadd.f32 %v1008, %v1009
          %v1011 = vsel %vm690, %v982, 0.0
          %v1012 = vadd.f32 %v1010, %v1011
          %v1013 = vsel %vm690, %v983, 0.0
          %v1014 = vadd.f32 %v1012, %v1013
          %1015 = vadd.xlane.f32.xlu0 %v1014
          %v1016 = vpop.xlane.xlu0 %1015
          %v1017 = vrot.slane %v1016, 4
          %v1018 = vadd.f32 %v1016, %v1017
          %v1019 = vrot.slane %v1018, 2
          %v1020 = vadd.f32 %v1018, %v1019
          %v1021 = vrot.slane %v1020, 1
          %v1022 = vadd.f32 %v1020, %v1021
          %s1023 = vtos %v1022
          %s1024 = ssub.f32 0.0, %s1023
          %s1025 = smul.f32 %s1024, 0.00390625
          %v1026 = vld [vmem:[#allocation3] sm:$0xff]
          %v1027 = vld [vmem:[#allocation3 + $0x8] sm:$0xff]
          %v1028 = vld [vmem:[#allocation3 + $0x10] sm:$0xff]
          %v1029 = vld [vmem:[#allocation3 + $0x18] sm:$0xff]
          %v1030 = vld [vmem:[#allocation3 + $0x20] sm:$0xff]
          %v1031 = vld [vmem:[#allocation3 + $0x28] sm:$0xff]
          %v1032 = vld [vmem:[#allocation3 + $0x30] sm:$0xff]
          %v1033 = vld [vmem:[#allocation3 + $0x38] sm:$0xff]
          %v1034 = vld [vmem:[#allocation3 + $0x40] sm:$0xff]
          %v1035 = vld [vmem:[#allocation3 + $0x48] sm:$0xff]
          %v1036 = vld [vmem:[#allocation3 + $0x50] sm:$0xff]
          %v1037 = vld [vmem:[#allocation3 + $0x58] sm:$0xff]
          %v1038 = vld [vmem:[#allocation3 + $0x60] sm:$0xff]
          %v1039 = vld [vmem:[#allocation3 + $0x68] sm:$0xff]
          %v1040 = vld [vmem:[#allocation3 + $0x70] sm:$0xff]
          %v1041 = vld [vmem:[#allocation3 + $0x78] sm:$0xff]
          %v1042 = vsel %vm819, %v1026, 0.0
          %v1043 = vsel %vm819, %v1027, 0.0
          %v1044 = vadd.f32 %v1042, %v1043
          %v1045 = vsel %vm819, %v1028, 0.0
          %v1046 = vadd.f32 %v1044, %v1045
          %v1047 = vsel %vm819, %v1029, 0.0
          %v1048 = vadd.f32 %v1046, %v1047
          %v1049 = vsel %vm819, %v1030, 0.0
          %v1050 = vadd.f32 %v1048, %v1049
          %v1051 = vsel %vm819, %v1031, 0.0
          %v1052 = vadd.f32 %v1050, %v1051
          %v1053 = vsel %vm819, %v1032, 0.0
          %v1054 = vadd.f32 %v1052, %v1053
          %v1055 = vsel %vm819, %v1033, 0.0
          %v1056 = vadd.f32 %v1054, %v1055
          %v1057 = vsel %vm819, %v1034, 0.0
          %v1058 = vadd.f32 %v1056, %v1057
          %v1059 = vsel %vm819, %v1035, 0.0
          %v1060 = vadd.f32 %v1058, %v1059
          %v1061 = vsel %vm819, %v1036, 0.0
          %v1062 = vadd.f32 %v1060, %v1061
          %v1063 = vsel %vm819, %v1037, 0.0
          %v1064 = vadd.f32 %v1062, %v1063
          %v1065 = vsel %vm819, %v1038, 0.0
          %v1066 = vadd.f32 %v1064, %v1065
          %v1067 = vsel %vm819, %v1039, 0.0
          %v1068 = vadd.f32 %v1066, %v1067
          %v1069 = vsel %vm819, %v1040, 0.0
          %v1070 = vadd.f32 %v1068, %v1069
          %v1071 = vsel %vm819, %v1041, 0.0
          %v1072 = vadd.f32 %v1070, %v1071
          %1073 = vadd.xlane.f32.xlu0 %v1072
          %v1074 = vpop.xlane.xlu0 %1073
          %v1075 = vrot.slane %v1074, 4
          %v1076 = vadd.f32 %v1074, %v1075
          %v1077 = vrot.slane %v1076, 2
          %v1078 = vadd.f32 %v1076, %v1077
          %v1079 = vrot.slane %v1078, 1
          %v1080 = vadd.f32 %v1078, %v1079
          %s1081 = vtos %v1080
          %s1082 = smul.f32 %s1081, 0.00012207031
          %v1083 = vld [vmem:[#allocation4] sm:$0xff]
          %v1084 = vld [vmem:[#allocation4 + $0x8] sm:$0xff]
          %v1085 = vld [vmem:[#allocation4 + $0x10] sm:$0xff]
          %v1086 = vld [vmem:[#allocation4 + $0x18] sm:$0xff]
          %v1087 = vld [vmem:[#allocation4 + $0x20] sm:$0xff]
          %v1088 = vld [vmem:[#allocation4 + $0x28] sm:$0xff]
          %v1089 = vld [vmem:[#allocation4 + $0x30] sm:$0xff]
          %v1090 = vld [vmem:[#allocation4 + $0x38] sm:$0xff]
          %v1091 = vld [vmem:[#allocation4 + $0x40] sm:$0xff]
          %v1092 = vld [vmem:[#allocation4 + $0x48] sm:$0xff]
          %v1093 = vld [vmem:[#allocation4 + $0x50] sm:$0xff]
          %v1094 = vld [vmem:[#allocation4 + $0x58] sm:$0xff]
          %v1095 = vld [vmem:[#allocation4 + $0x60] sm:$0xff]
          %v1096 = vld [vmem:[#allocation4 + $0x68] sm:$0xff]
          %v1097 = vld [vmem:[#allocation4 + $0x70] sm:$0xff]
          %v1098 = vld [vmem:[#allocation4 + $0x78] sm:$0xff]
          %v1099 = vsel %vm819, %v1083, 0.0
          %v1100 = vsel %vm819, %v1084, 0.0
          %v1101 = vadd.f32 %v1099, %v1100
          %v1102 = vsel %vm819, %v1085, 0.0
          %v1103 = vadd.f32 %v1101, %v1102
          %v1104 = vsel %vm819, %v1086, 0.0
          %v1105 = vadd.f32 %v1103, %v1104
          %v1106 = vsel %vm819, %v1087, 0.0
          %v1107 = vadd.f32 %v1105, %v1106
          %v1108 = vsel %vm819, %v1088, 0.0
          %v1109 = vadd.f32 %v1107, %v1108
          %v1110 = vsel %vm819, %v1089, 0.0
          %v1111 = vadd.f32 %v1109, %v1110
          %v1112 = vsel %vm819, %v1090, 0.0
          %v1113 = vadd.f32 %v1111, %v1112
          %v1114 = vsel %vm819, %v1091, 0.0
          %v1115 = vadd.f32 %v1113, %v1114
          %v1116 = vsel %vm819, %v1092, 0.0
          %v1117 = vadd.f32 %v1115, %v1116
          %v1118 = vsel %vm819, %v1093, 0.0
          %v1119 = vadd.f32 %v1117, %v1118
          %v1120 = vsel %vm819, %v1094, 0.0
          %v1121 = vadd.f32 %v1119, %v1120
          %v1122 = vsel %vm819, %v1095, 0.0
          %v1123 = vadd.f32 %v1121, %v1122
          %v1124 = vsel %vm819, %v1096, 0.0
          %v1125 = vadd.f32 %v1123, %v1124
          %v1126 = vsel %vm819, %v1097, 0.0
          %v1127 = vadd.f32 %v1125, %v1126
          %v1128 = vsel %vm819, %v1098, 0.0
          %v1129 = vadd.f32 %v1127, %v1128
          %1130 = vadd.xlane.f32.xlu0 %v1129
          %v1131 = vpop.xlane.xlu0 %1130
          %v1132 = vrot.slane %v1131, 4
          %v1133 = vadd.f32 %v1131, %v1132
          %v1134 = vrot.slane %v1133, 2
          %v1135 = vadd.f32 %v1133, %v1134
          %v1136 = vrot.slane %v1135, 1
          %v1137 = vadd.f32 %v1135, %v1136
          %s1138 = vtos %v1137
          %s1139 = smul.f32 %s1138, 0.00012207031
          %s1140 = sld [smem:[#allocation5]]
          %s1141 = sld [smem:[#allocation5 + $0x1]]
          %s1142 = sld [smem:[#allocation5 + $0x2]]
          %s1143 = ssub.f32 0.0, %s1140
          %v1144 = vstv %s1143
          %v1145 = vmul.f32 %v1144, 1.442695
          %v1146 = vpow.pop %v1145
          %s1147 = vtos %v1146
          %s1148 = smul.f32 %s1147, %s1025
          %s1149 = sadd.f32 %s1148, %s1140
          %s1150 = ssub.f32 0.0, %s1141
          %v1151 = vstv %s1150
          %v1152 = vmul.f32 %v1151, 1.442695
          %v1153 = vpow.pop %v1152
          %s1154 = vtos %v1153
          %s1155 = smul.f32 %s1154, %s1082
          %s1156 = sadd.f32 %s1149, %s1155
          %s1157 = sadd.f32 %s1156, %s1141
          %s1158 = ssub.f32 0.0, %s1142
          %v1159 = vstv %s1158
          %v1160 = vmul.f32 %v1159, 1.442695
          %v1161 = vpow.pop %v1160
          %s1162 = vtos %v1161
          %s1163 = smul.f32 %s1162, %s1139
          %s1164 = sadd.f32 %s1157, %s1163
          %s1165 = sadd.f32 %s1164, %s1142
          %s1166 = scalar_lea.smem [#allocation8], 0
          %1167 = sst [smem:[%s1166]] %s1165
        $region60: #{tpu_custom_call.1} parent=47 // pred_fallthru
          _
        // Predicated region
        $region61: #{tpu_custom_call.1} parent=47 // pred_check
          %p1168 = pneg %p210
        $region62: #{tpu_custom_call.1} parent=47 // pred_check_branch
          %1170 = sbr.rel (%p1168) target = $region64
        $region63: #{tpu_custom_call.1} parent=47 // pred_region
          %s1172 = ssub.s32 16, 16
          %1173 = vsyncadd [#allocation6], %s1172
          %1176 = dma.smem_to_hbm [#allocation8], 16, %s7, [#allocation6]
        $region64: #{tpu_custom_call.1} parent=47 // pred_fallthru
          _
        // Predicated region
        $region65: #{tpu_custom_call.1} parent=47 // pred_check
          %p1177 = pneg %p210
        $region66: #{tpu_custom_call.1} parent=47 // pred_check_branch
          %1179 = sbr.rel (%p1177) target = $region68
        $region67: #{tpu_custom_call.1} parent=47 // pred_region
          %1180 = dma.done [#allocation6], 16
        $region68: #{tpu_custom_call.1} parent=47 // pred_fallthru
          _
        %1181 = sfence
      $region48: #{tpu_custom_call.1} parent=5 // pred_fallthru
        _
      %p1182 = scmp.le.s32.totalorder 2, %s15
      // Predicated region
      $region69: #{tpu_custom_call.1} parent=5 // pred_check
        %p1183 = pneg %p1182
      $region70: #{tpu_custom_call.1} parent=5 // pred_check_branch
        %1185 = sbr.rel (%p1183) target = $region72
      $region71: #{tpu_custom_call.1} parent=5 // pred_region
        %s1186 = ssub.s32 %s15, 2
      $region72: #{tpu_custom_call.1} parent=5 // pred_fallthru
        _
    $region6: #{tpu_custom_call.1} parent=1 // loop_footer
      %s19 = sadd.s32 1, %s15
    $region7: #{tpu_custom_call.1} parent=1 // loop_footer_branch
      %14 = sbr.rel target = $region3
    $region8: #{tpu_custom_call.1} parent=1 // loop_exit
      _
    %1187 = vsyncpa [#allocation6], 1
    %s1188 = scalar_lea.sflag [#allocation6], 1
    %1189 = vsyncpa %s1188, 1
    %1190 = vsyncpa [#allocation7], 1
    %s1191 = scalar_lea.sflag [#allocation7], 1
    %1192 = vsyncpa %s1191, 1

</llo_original>
